<compile_context>
chip_gen: v7x
topology: tpu7x:2x2x1
jax: 0.10.0
libtpu: 0.0.40
codegen_flags: <defaults>
</compile_context>

<pallas_src>
import jax
import jax.numpy as jnp
import numpy as np
from jax.experimental import pallas as pl
from jax.experimental.pallas import tpu as pltpu


# ----------------------------------------------------------------------------- #
# Fused per-layer Pallas kernel
# ----------------------------------------------------------------------------- #
def _fused_gp_layer_kernel(scal_ref, z2c_ref, negc_ref, zb_ref, w_ref, cmat_ref,
                           x_ref, out_ref):
    """One N-tile of the sparse-GP posterior.

    scal_ref : SMEM (1,)       = [variance]  (== K_ff diag for RBF)
    z2c_ref  : VMEM (M, D)     = 2*c * Z                    (c = 0.5 / ls^2)
    negc_ref : VMEM (1, D)     = -c (constant row, folds ||x||^2 scaling into MXU)
    zb_ref   : VMEM (M, 1)     = log_var - c * ||z_i||^2
    w_ref    : VMEM (M, 1)     = L^{-T} variational_mean
    cmat_ref : VMEM (M, M)     = L^{-T} (S - I) L^{-1}
    x_ref    : VMEM (TN, D)    tile of test points
    out_ref  : VMEM (2, TN)    row 0 = mean, row 1 = variance
    """
    variance = scal_ref[0]
    x = x_ref[...]                                                    # (TN, D)

    # cross[i, j] = 2c * z_i . x_j   — RHS consumed in natural (TN, D) layout.
    cross = jax.lax.dot_general(z2c_ref[...], x, (((1,), (1,)), ((), ())),
                                preferred_element_type=jnp.float32)   # (M, TN)
    # xsq[0, j] = -c * ||x_j||^2     — produced directly in (1, TN) layout on MXU.
    xsq = jax.lax.dot_general(negc_ref[...], x * x, (((1,), (1,)), ((), ())),
                              preferred_element_type=jnp.float32)     # (1, TN)

    # exponent = log_var - c * (||z||^2 + ||x||^2 - 2 z.x)
    expo = cross + zb_ref[...] + xsq                                  # (M, TN)
    kuf = jnp.minimum(jnp.exp(expo), variance)                        # clamp d2 >= 0

    mean = jnp.sum(w_ref[...] * kuf, axis=0, keepdims=True)           # (1, TN)
    tmp = jnp.dot(cmat_ref[...], kuf, preferred_element_type=jnp.float32)  # (M, TN)
    var = variance + jnp.sum(tmp * kuf, axis=0, keepdims=True)        # (1, TN)

    out_ref[...] = jnp.concatenate([mean, var], axis=0)               # (2, TN)


def _round_up(n, m):
    return ((n + m - 1) // m) * m


_MAX_TILE_N = 2048  # per-tile VMEM: TN*(D)*4 + 2*TN*4 (x2 buffers) — well under limits


# ----------------------------------------------------------------------------- #
# GaussianProcessPreferences.forward (RBF kernel, return_variance=True)
# ----------------------------------------------------------------------------- #
def gp_layer_forward(params, x_new):
    # mirrors GaussianProcessPreferences.forward; x_new: (..., feature_dim)
    assert x_new.ndim >= 2, "torch.cdist requires >= 2D inputs"
    lead = x_new.shape[:-1]
    D = x_new.shape[-1]
    xf = x_new.reshape(-1, D).astype(jnp.float32)
    N = xf.shape[0]

    Z = params["inducing_points"].astype(jnp.float32)
    M = Z.shape[0]
    log_var = params["log_variance"].astype(jnp.float32)
    variance = jnp.exp(log_var)
    ls = jnp.exp(params["log_lengthscale"].astype(jnp.float32))
    c = 0.5 / (ls * ls)

    # ---- tiny M-sized setup in plain JAX (K_uu, Cholesky, whitened factors) ----
    # TODO(synk): Cholesky + triangular solve are small (MxM) sequential linalg
    # with no clean Pallas equivalent; kept in plain JAX / XLA.
    zsq = jnp.sum(Z * Z, axis=-1)                                      # (M,)
    d2_uu = jnp.maximum(zsq[:, None] + zsq[None, :] - 2.0 * (Z @ Z.T), 0.0)
    K_uu = variance * jnp.exp(-c * d2_uu) + 1e-6 * jnp.eye(M, dtype=jnp.float32)
    L = jnp.linalg.cholesky(K_uu)
    Linv = jax.scipy.linalg.solve_triangular(L, jnp.eye(M, dtype=jnp.float32),
                                             lower=True)               # L^{-1}
    w = Linv.T @ params["variational_mean"].astype(jnp.float32)        # (M,) = L^{-T} m
    s = jnp.exp(params["variational_logvar"].astype(jnp.float32))      # (M,)
    Cmat = Linv.T @ ((s - 1.0)[:, None] * Linv)                        # L^{-T}(S-I)L^{-1}

    # Small, grid-resident kernel inputs (lengthscale / variance folded in).
    z2c = (2.0 * c) * Z                                                # (M, D)
    negc_row = jnp.full((1, D), -c, dtype=jnp.float32)                 # (1, D)
    zb = (log_var - c * zsq)[:, None]                                  # (M, 1)
    w2d = w[:, None]                                                   # (M, 1)
    scal = jnp.reshape(variance, (1,)).astype(jnp.float32)             # SMEM scalar

    # ---- tile / pad the flattened test-point axis -----------------------------
    n_pad0 = _round_up(max(N, 1), 128)
    tn = min(n_pad0, _MAX_TILE_N)
    n_pad = _round_up(n_pad0, tn)
    xf_pad = jnp.pad(xf, ((0, n_pad - N), (0, 0)))   # padded rows sliced off below

    out = pl.pallas_call(
        _fused_gp_layer_kernel,
        out_shape=jax.ShapeDtypeStruct((2, n_pad), jnp.float32),
        grid=(n_pad // tn,),
        in_specs=[
            pl.BlockSpec(memory_space=pltpu.MemorySpace.SMEM),   # scalars
            pl.BlockSpec((M, D), lambda j: (0, 0)),              # z2c (resident)
            pl.BlockSpec((1, D), lambda j: (0, 0)),              # -c row
            pl.BlockSpec((M, 1), lambda j: (0, 0)),              # zb
            pl.BlockSpec((M, 1), lambda j: (0, 0)),              # w
            pl.BlockSpec((M, M), lambda j: (0, 0)),              # C
            pl.BlockSpec((tn, D), lambda j: (j, 0)),             # x tile
        ],
        out_specs=pl.BlockSpec((2, tn), lambda j: (0, j)),
        compiler_params=pltpu.CompilerParams(
            dimension_semantics=("parallel",)),
    )(scal, z2c, negc_row, zb, w2d, Cmat, xf_pad)

    mean = out[0, :N]
    var = out[1, :N]
    return mean.reshape(lead), var.reshape(lead)


# ----------------------------------------------------------------------------- #
# DeepGPPreferences (eval-mode forward: current_input = layer mean)
# ----------------------------------------------------------------------------- #
def init_deep_gp_params(key, input_dim, hidden_dims, num_inducing_per_layer):
    params = []
    current_dim = input_dim
    for hidden_dim, num_ind in zip(hidden_dims, num_inducing_per_layer):
        key, k1, k2, k3 = jax.random.split(key, 4)
        params.append({
            "log_lengthscale": jnp.asarray(jnp.log(1.0), jnp.float32),
            "log_variance": jnp.asarray(jnp.log(1.0), jnp.float32),
            "log_noise_variance": jnp.asarray(jnp.log(0.1), jnp.float32),
            "inducing_points": 0.1 * jax.random.normal(k1, (num_ind, current_dim), jnp.float32),
            # module __init__ uses zeros here; small deterministic random values keep
            # the demo non-degenerate (shapes are identical to the PyTorch module)
            "variational_mean": 0.1 * jax.random.normal(k2, (num_ind,), jnp.float32),
            "variational_logvar": 0.1 * jax.random.normal(k3, (num_ind,), jnp.float32),
        })
        current_dim = hidden_dim
    return params


def deep_gp_forward(params_list, x):
    current_input = x
    var = None
    for layer_params in params_list:
        mean, var = gp_layer_forward(layer_params, current_input)
        current_input = mean
    return current_input, var


# ----------------------------------------------------------------------------- #
# Pure-JAX reference (literal translation of the PyTorch forward, for checking)
# ----------------------------------------------------------------------------- #
def _rbf_ref(x1, x2, ls, var):
    d2 = jnp.sum((x1[:, None, :] / ls - x2[None, :, :] / ls) ** 2, axis=-1)
    return var * jnp.exp(-0.5 * d2)


def gp_layer_ref(params, x_new):
    lead = x_new.shape[:-1]
    D = x_new.shape[-1]
    xf = x_new.reshape(-1, D)
    Z = params["inducing_points"]
    M = Z.shape[0]
    ls = jnp.exp(params["log_lengthscale"])
    var = jnp.exp(params["log_variance"])
    K_uu = _rbf_ref(Z, Z, ls, var) + 1e-6 * jnp.eye(M)
    K_uf = _rbf_ref(Z, xf, ls, var)
    K_ff_diag = jnp.diagonal(_rbf_ref(xf, xf, ls, var))
    L = jnp.linalg.cholesky(K_uu)
    A = jax.scipy.linalg.solve_triangular(L, K_uf, lower=True)
    S = jnp.diag(jnp.exp(params["variational_logvar"]))
    mean = A.T @ params["variational_mean"]
    variance = K_ff_diag - jnp.sum(A ** 2, axis=0) + jnp.diagonal(A.T @ S @ A)
    return mean.reshape(lead), variance.reshape(lead)


def deep_gp_ref(params_list, x):
    current, var = x, None
    for p in params_list:
        mean, var = gp_layer_ref(p, current)
        current = mean
    return current, var


# ----------------------------------------------------------------------------- #
if __name__ == "__main__":
    key = jax.random.PRNGKey(0)
    kp, kx = jax.random.split(key)

    # Small config. The PyTorch stacking only type-checks when the previous layer's
    # point count equals the next layer's feature_dim (torch.cdist last-dim match),
    # so num_points == hidden_dims[0].
    input_dim = 16
    hidden_dims = [8, 4]
    num_inducing_per_layer = [16, 16]

    params = init_deep_gp_params(kp, input_dim, hidden_dims, num_inducing_per_layer)

    # x: (batch=2, num_points=8, input_dim=16)
    x = jax.random.normal(kx, (2, 8, input_dim), jnp.float32)

    fwd = jax.jit(deep_gp_forward)
    mean, var = fwd(params, x)
    jax.block_until_ready((mean, var))

    mean_ref, var_ref = deep_gp_ref(params, x)
    np.testing.assert_allclose(np.asarray(mean), np.asarray(mean_ref), rtol=2e-3, atol=2e-3)
    np.testing.assert_allclose(np.asarray(var), np.asarray(var_ref), rtol=2e-3, atol=2e-3)

    print("KERNEL_OK")
</pallas_src>

<mosaic_0001>
module attributes {stable_mosaic.version = 11 : i64} {
  func.func @_fused_gp_layer_kernel(%arg0: i32, %arg1: memref<1xf32, #tpu.memory_space<smem>>, %arg2: memref<16x16xf32, #tpu.memory_space<vmem>>, %arg3: memref<1x16xf32, #tpu.memory_space<vmem>>, %arg4: memref<16x1xf32, #tpu.memory_space<vmem>>, %arg5: memref<16x1xf32, #tpu.memory_space<vmem>>, %arg6: memref<16x16xf32, #tpu.memory_space<vmem>>, %arg7: memref<128x16xf32, #tpu.memory_space<vmem>>, %arg8: memref<2x128xf32, #tpu.memory_space<vmem>>) attributes {dimension_semantics = [#tpu.dimension_semantics<parallel>], iteration_bounds = array<i64: 1>, scalar_prefetch = 0 : i64, scratch_operands = 0 : i64, tpu.core_type = #tpu.core_type<tc>, window_params = [{transform_indices = @transform_0, window_bounds = array<i64: 1>}, {pipeline_mode = #tpu.pipeline_mode<synchronous>, transform_indices = @transform_1, window_bounds = array<i64: 16, 16>}, {pipeline_mode = #tpu.pipeline_mode<synchronous>, transform_indices = @transform_2, window_bounds = array<i64: 1, 16>}, {pipeline_mode = #tpu.pipeline_mode<synchronous>, transform_indices = @transform_3, window_bounds = array<i64: 16, 1>}, {pipeline_mode = #tpu.pipeline_mode<synchronous>, transform_indices = @transform_4, window_bounds = array<i64: 16, 1>}, {pipeline_mode = #tpu.pipeline_mode<synchronous>, transform_indices = @transform_5, window_bounds = array<i64: 16, 16>}, {transform_indices = @transform_6, window_bounds = array<i64: 128, 16>}, {transform_indices = @transform_7, window_bounds = array<i64: 2, 128>}]} {
    %c0 = arith.constant 0 : index
    %0 = memref.load %arg1[%c0] : memref<1xf32, #tpu.memory_space<smem>>
    %c0_0 = arith.constant 0 : index
    %c0_1 = arith.constant 0 : index
    %1 = vector.load %arg7[%c0_0, %c0_1] : memref<128x16xf32, #tpu.memory_space<vmem>>, vector<128x16xf32>
    %c0_2 = arith.constant 0 : index
    %c0_3 = arith.constant 0 : index
    %2 = vector.load %arg2[%c0_2, %c0_3] : memref<16x16xf32, #tpu.memory_space<vmem>>, vector<16x16xf32>
    %cst = arith.constant dense<0.000000e+00> : vector<16x128xf32>
    %3 = tpu.matmul %2, %1, %cst {dimension_numbers = #tpu.dot_dimension_numbers<[1], [1], [0], [0], [0, 0, 1, 0], [], []>} : vector<16x16xf32>, vector<128x16xf32>, vector<16x128xf32> -> vector<16x128xf32>
    %c0_4 = arith.constant 0 : index
    %c0_5 = arith.constant 0 : index
    %4 = vector.load %arg3[%c0_4, %c0_5] : memref<1x16xf32, #tpu.memory_space<vmem>>, vector<1x16xf32>
    %5 = arith.mulf %1, %1 : vector<128x16xf32>
    %cst_6 = arith.constant dense<0.000000e+00> : vector<1x128xf32>
    %6 = tpu.matmul %4, %5, %cst_6 {dimension_numbers = #tpu.dot_dimension_numbers<[1], [1], [0], [0], [0, 0, 1, 0], [], []>} : vector<1x16xf32>, vector<128x16xf32>, vector<1x128xf32> -> vector<1x128xf32>
    %c0_7 = arith.constant 0 : index
    %c0_8 = arith.constant 0 : index
    %7 = vector.load %arg4[%c0_7, %c0_8] : memref<16x1xf32, #tpu.memory_space<vmem>>, vector<16x1xf32>
    %8 = vector.broadcast %7 : vector<16x1xf32> to vector<16x128xf32>
    %9 = arith.addf %3, %8 : vector<16x128xf32>
    %10 = vector.broadcast %6 : vector<1x128xf32> to vector<16x128xf32>
    %11 = arith.addf %9, %10 : vector<16x128xf32>
    %12 = math.exp %11 : vector<16x128xf32>
    %13 = vector.broadcast %0 : f32 to vector<16x128xf32>
    %14 = arith.minimumf %12, %13 : vector<16x128xf32>
    %c0_9 = arith.constant 0 : index
    %c0_10 = arith.constant 0 : index
    %15 = vector.load %arg5[%c0_9, %c0_10] : memref<16x1xf32, #tpu.memory_space<vmem>>, vector<16x1xf32>
    %16 = vector.broadcast %15 : vector<16x1xf32> to vector<16x128xf32>
    %17 = arith.mulf %16, %14 : vector<16x128xf32>
    %cst_11 = arith.constant dense<0.000000e+00> : vector<128xf32>
    %18 = vector.multi_reduction <add>, %17, %cst_11 [0] : vector<16x128xf32> to vector<128xf32>
    %19 = vector.shape_cast %18 : vector<128xf32> to vector<1x128xf32>
    %c0_12 = arith.constant 0 : index
    %c0_13 = arith.constant 0 : index
    %20 = vector.load %arg6[%c0_12, %c0_13] : memref<16x16xf32, #tpu.memory_space<vmem>>, vector<16x16xf32>
    %cst_14 = arith.constant dense<0.000000e+00> : vector<16x128xf32>
    %21 = tpu.matmul %20, %14, %cst_14 {dimension_numbers = #tpu.dot_dimension_numbers<[1], [0], [0], [1], [0, 0, 1, 1], [], []>} : vector<16x16xf32>, vector<16x128xf32>, vector<16x128xf32> -> vector<16x128xf32>
    %22 = arith.mulf %21, %14 : vector<16x128xf32>
    %cst_15 = arith.constant dense<0.000000e+00> : vector<128xf32>
    %23 = vector.multi_reduction <add>, %22, %cst_15 [0] : vector<16x128xf32> to vector<128xf32>
    %24 = vector.shape_cast %23 : vector<128xf32> to vector<1x128xf32>
    %25 = vector.broadcast %0 : f32 to vector<1x128xf32>
    %26 = arith.addf %25, %24 : vector<1x128xf32>
    %27 = tpu.concatenate %19, %26 in 0 : vector<1x128xf32>, vector<1x128xf32> -> vector<2x128xf32>
    %c0_16 = arith.constant 0 : index
    %c0_17 = arith.constant 0 : index
    %28 = vector.load %arg8[%c0_16, %c0_17] : memref<2x128xf32, #tpu.memory_space<vmem>>, vector<2x128xf32>
    tpu.vector_store %arg8[%c0_16, %c0_17], %27 {strides = array<i32>} : memref<2x128xf32, #tpu.memory_space<vmem>>, vector<2x128xf32>,
    return
  }
  func.func @transform_0(%arg0: i32) -> i32 {
    %c0_i32 = arith.constant 0 : i32
    %c0_i32_0 = arith.constant 0 : i32
    return %c0_i32 : i32
  }
  func.func @transform_1(%arg0: i32) -> (i32, i32) {
    %c0_i32 = arith.constant 0 : i32
    %c0_i32_0 = arith.constant 0 : i32
    %c0_i32_1 = arith.constant 0 : i32
    return %c0_i32, %c0_i32_0 : i32, i32
  }
  func.func @transform_2(%arg0: i32) -> (i32, i32) {
    %c0_i32 = arith.constant 0 : i32
    %c0_i32_0 = arith.constant 0 : i32
    %c0_i32_1 = arith.constant 0 : i32
    return %c0_i32, %c0_i32_0 : i32, i32
  }
  func.func @transform_3(%arg0: i32) -> (i32, i32) {
    %c0_i32 = arith.constant 0 : i32
    %c0_i32_0 = arith.constant 0 : i32
    %c0_i32_1 = arith.constant 0 : i32
    return %c0_i32, %c0_i32_0 : i32, i32
  }
  func.func @transform_4(%arg0: i32) -> (i32, i32) {
    %c0_i32 = arith.constant 0 : i32
    %c0_i32_0 = arith.constant 0 : i32
    %c0_i32_1 = arith.constant 0 : i32
    return %c0_i32, %c0_i32_0 : i32, i32
  }
  func.func @transform_5(%arg0: i32) -> (i32, i32) {
    %c0_i32 = arith.constant 0 : i32
    %c0_i32_0 = arith.constant 0 : i32
    %c0_i32_1 = arith.constant 0 : i32
    return %c0_i32, %c0_i32_0 : i32, i32
  }
  func.func @transform_6(%arg0: i32) -> (i32, i32) {
    %c0_i32 = arith.constant 0 : i32
    %c0_i32_0 = arith.constant 0 : i32
    return %arg0, %c0_i32 : i32, i32
  }
  func.func @transform_7(%arg0: i32) -> (i32, i32) {
    %c0_i32 = arith.constant 0 : i32
    %c0_i32_0 = arith.constant 0 : i32
    return %c0_i32, %arg0 : i32, i32
  }
}

module attributes {stable_mosaic.version = 11 : i64} {
  func.func @_fused_gp_layer_kernel(%arg0: i32, %arg1: memref<1xf32, #tpu.memory_space<smem>>, %arg2: memref<16x8xf32, #tpu.memory_space<vmem>>, %arg3: memref<1x8xf32, #tpu.memory_space<vmem>>, %arg4: memref<16x1xf32, #tpu.memory_space<vmem>>, %arg5: memref<16x1xf32, #tpu.memory_space<vmem>>, %arg6: memref<16x16xf32, #tpu.memory_space<vmem>>, %arg7: memref<128x8xf32, #tpu.memory_space<vmem>>, %arg8: memref<2x128xf32, #tpu.memory_space<vmem>>) attributes {dimension_semantics = [#tpu.dimension_semantics<parallel>], iteration_bounds = array<i64: 1>, scalar_prefetch = 0 : i64, scratch_operands = 0 : i64, tpu.core_type = #tpu.core_type<tc>, window_params = [{transform_indices = @transform_0, window_bounds = array<i64: 1>}, {pipeline_mode = #tpu.pipeline_mode<synchronous>, transform_indices = @transform_1, window_bounds = array<i64: 16, 8>}, {pipeline_mode = #tpu.pipeline_mode<synchronous>, transform_indices = @transform_2, window_bounds = array<i64: 1, 8>}, {pipeline_mode = #tpu.pipeline_mode<synchronous>, transform_indices = @transform_3, window_bounds = array<i64: 16, 1>}, {pipeline_mode = #tpu.pipeline_mode<synchronous>, transform_indices = @transform_4, window_bounds = array<i64: 16, 1>}, {pipeline_mode = #tpu.pipeline_mode<synchronous>, transform_indices = @transform_5, window_bounds = array<i64: 16, 16>}, {transform_indices = @transform_6, window_bounds = array<i64: 128, 8>}, {transform_indices = @transform_7, window_bounds = array<i64: 2, 128>}]} {
    %c0 = arith.constant 0 : index
    %0 = memref.load %arg1[%c0] : memref<1xf32, #tpu.memory_space<smem>>
    %c0_0 = arith.constant 0 : index
    %c0_1 = arith.constant 0 : index
    %1 = vector.load %arg7[%c0_0, %c0_1] : memref<128x8xf32, #tpu.memory_space<vmem>>, vector<128x8xf32>
    %c0_2 = arith.constant 0 : index
    %c0_3 = arith.constant 0 : index
    %2 = vector.load %arg2[%c0_2, %c0_3] : memref<16x8xf32, #tpu.memory_space<vmem>>, vector<16x8xf32>
    %cst = arith.constant dense<0.000000e+00> : vector<16x128xf32>
    %3 = tpu.matmul %2, %1, %cst {dimension_numbers = #tpu.dot_dimension_numbers<[1], [1], [0], [0], [0, 0, 1, 0], [], []>} : vector<16x8xf32>, vector<128x8xf32>, vector<16x128xf32> -> vector<16x128xf32>
    %c0_4 = arith.constant 0 : index
    %c0_5 = arith.constant 0 : index
    %4 = vector.load %arg3[%c0_4, %c0_5] : memref<1x8xf32, #tpu.memory_space<vmem>>, vector<1x8xf32>
    %5 = arith.mulf %1, %1 : vector<128x8xf32>
    %cst_6 = arith.constant dense<0.000000e+00> : vector<1x128xf32>
    %6 = tpu.matmul %4, %5, %cst_6 {dimension_numbers = #tpu.dot_dimension_numbers<[1], [1], [0], [0], [0, 0, 1, 0], [], []>} : vector<1x8xf32>, vector<128x8xf32>, vector<1x128xf32> -> vector<1x128xf32>
    %c0_7 = arith.constant 0 : index
    %c0_8 = arith.constant 0 : index
    %7 = vector.load %arg4[%c0_7, %c0_8] : memref<16x1xf32, #tpu.memory_space<vmem>>, vector<16x1xf32>
    %8 = vector.broadcast %7 : vector<16x1xf32> to vector<16x128xf32>
    %9 = arith.addf %3, %8 : vector<16x128xf32>
    %10 = vector.broadcast %6 : vector<1x128xf32> to vector<16x128xf32>
    %11 = arith.addf %9, %10 : vector<16x128xf32>
    %12 = math.exp %11 : vector<16x128xf32>
    %13 = vector.broadcast %0 : f32 to vector<16x128xf32>
    %14 = arith.minimumf %12, %13 : vector<16x128xf32>
    %c0_9 = arith.constant 0 : index
    %c0_10 = arith.constant 0 : index
    %15 = vector.load %arg5[%c0_9, %c0_10] : memref<16x1xf32, #tpu.memory_space<vmem>>, vector<16x1xf32>
    %16 = vector.broadcast %15 : vector<16x1xf32> to vector<16x128xf32>
    %17 = arith.mulf %16, %14 : vector<16x128xf32>
    %cst_11 = arith.constant dense<0.000000e+00> : vector<128xf32>
    %18 = vector.multi_reduction <add>, %17, %cst_11 [0] : vector<16x128xf32> to vector<128xf32>
    %19 = vector.shape_cast %18 : vector<128xf32> to vector<1x128xf32>
    %c0_12 = arith.constant 0 : index
    %c0_13 = arith.constant 0 : index
    %20 = vector.load %arg6[%c0_12, %c0_13] : memref<16x16xf32, #tpu.memory_space<vmem>>, vector<16x16xf32>
    %cst_14 = arith.constant dense<0.000000e+00> : vector<16x128xf32>
    %21 = tpu.matmul %20, %14, %cst_14 {dimension_numbers = #tpu.dot_dimension_numbers<[1], [0], [0], [1], [0, 0, 1, 1], [], []>} : vector<16x16xf32>, vector<16x128xf32>, vector<16x128xf32> -> vector<16x128xf32>
    %22 = arith.mulf %21, %14 : vector<16x128xf32>
    %cst_15 = arith.constant dense<0.000000e+00> : vector<128xf32>
    %23 = vector.multi_reduction <add>, %22, %cst_15 [0] : vector<16x128xf32> to vector<128xf32>
    %24 = vector.shape_cast %23 : vector<128xf32> to vector<1x128xf32>
    %25 = vector.broadcast %0 : f32 to vector<1x128xf32>
    %26 = arith.addf %25, %24 : vector<1x128xf32>
    %27 = tpu.concatenate %19, %26 in 0 : vector<1x128xf32>, vector<1x128xf32> -> vector<2x128xf32>
    %c0_16 = arith.constant 0 : index
    %c0_17 = arith.constant 0 : index
    %28 = vector.load %arg8[%c0_16, %c0_17] : memref<2x128xf32, #tpu.memory_space<vmem>>, vector<2x128xf32>
    tpu.vector_store %arg8[%c0_16, %c0_17], %27 {strides = array<i32>} : memref<2x128xf32, #tpu.memory_space<vmem>>, vector<2x128xf32>,
    return
  }
  func.func @transform_0(%arg0: i32) -> i32 {
    %c0_i32 = arith.constant 0 : i32
    %c0_i32_0 = arith.constant 0 : i32
    return %c0_i32 : i32
  }
  func.func @transform_1(%arg0: i32) -> (i32, i32) {
    %c0_i32 = arith.constant 0 : i32
    %c0_i32_0 = arith.constant 0 : i32
    %c0_i32_1 = arith.constant 0 : i32
    return %c0_i32, %c0_i32_0 : i32, i32
  }
  func.func @transform_2(%arg0: i32) -> (i32, i32) {
    %c0_i32 = arith.constant 0 : i32
    %c0_i32_0 = arith.constant 0 : i32
    %c0_i32_1 = arith.constant 0 : i32
    return %c0_i32, %c0_i32_0 : i32, i32
  }
  func.func @transform_3(%arg0: i32) -> (i32, i32) {
    %c0_i32 = arith.constant 0 : i32
    %c0_i32_0 = arith.constant 0 : i32
    %c0_i32_1 = arith.constant 0 : i32
    return %c0_i32, %c0_i32_0 : i32, i32
  }
  func.func @transform_4(%arg0: i32) -> (i32, i32) {
    %c0_i32 = arith.constant 0 : i32
    %c0_i32_0 = arith.constant 0 : i32
    %c0_i32_1 = arith.constant 0 : i32
    return %c0_i32, %c0_i32_0 : i32, i32
  }
  func.func @transform_5(%arg0: i32) -> (i32, i32) {
    %c0_i32 = arith.constant 0 : i32
    %c0_i32_0 = arith.constant 0 : i32
    %c0_i32_1 = arith.constant 0 : i32
    return %c0_i32, %c0_i32_0 : i32, i32
  }
  func.func @transform_6(%arg0: i32) -> (i32, i32) {
    %c0_i32 = arith.constant 0 : i32
    %c0_i32_0 = arith.constant 0 : i32
    return %arg0, %c0_i32 : i32, i32
  }
  func.func @transform_7(%arg0: i32) -> (i32, i32) {
    %c0_i32 = arith.constant 0 : i32
    %c0_i32_0 = arith.constant 0 : i32
    return %c0_i32, %arg0 : i32, i32
  }
}

</mosaic_0001>

<llo_original>
// kernel: custom-call.8
$region0: #{custom-call.8}
  %s0 = inlined_call_operand.vmem [shape: f32[16,16], index: 0, kind: input, shape index: {}]
  %s1 = inlined_call_operand.vmem [shape: f32[16,16], index: 1, kind: output, shape index: {}]
  $region1: #{custom-call.8} parent=0
    #allocation0 [shape = 'u8[8192]{0}', space=vmem, size = 0x2000, scoped, tag = 'operand span for operand 0']
    #allocation1 [shape = 'u8[8192]{0}', space=vmem, size = 0x2000, scoped, tag = 'operand span for operand 1']
    // Predicated region
    $region2: #{custom-call.8} parent=1 // pred_check
      _
    $region3: #{custom-call.8} parent=1 // pred_check_branch
      %3 = sbr.rel (0) target = $region5
    $region4: #{custom-call.8} parent=1 // pred_region
      // Predicated region
      $region6: #{custom-call.8} parent=4 // pred_check
        _
      $region7: #{custom-call.8} parent=4 // pred_check_branch
        %5 = sbr.rel (0) target = $region9
      $region8: #{custom-call.8} parent=4 // pred_region
        // Predicated region
        $region21: #{custom-call.8} parent=8 // pred_check
          _
        $region22: #{custom-call.8} parent=8 // pred_check_branch
          %22 = sbr.rel (0) target = $region24
        $region23: #{custom-call.8} parent=8 // pred_region
          loop: start=0, step=1, limit=1
          $region25: #{custom-call.8} parent=23 // loop_pre_header
            _
          $region26: #{custom-call.8} parent=23 // loop_header
            %s24 = sphi 0, %s28
            %p25 = scmp.ge.s32.totalorder %s24, 1
            %s29 = sphi %s0, %s0
            %s30 = sphi [#allocation0], [#allocation0]
          $region27: #{custom-call.8} parent=23 // loop_header_branch
            %27 = sbr.rel (%p25) target = $region31
          $region28: #{custom-call.8} parent=23 // loop_body
            %v31 = vld [vmem:[%s29] sm:$0xff]
            %32 = vst [vmem:[%s30] sm:$0xff] %v31
            %v33 = vld [vmem:[%s29 + $0x8] sm:$0xff]
            %34 = vst [vmem:[%s30 + $0x8] sm:$0xff] %v33
          $region29: #{custom-call.8} parent=23 // loop_footer
            %s28 = sadd.s32 1, %s24
          $region30: #{custom-call.8} parent=23 // loop_footer_branch
            %23 = sbr.rel target = $region26
          $region31: #{custom-call.8} parent=23 // loop_exit
            _
        $region24: #{custom-call.8} parent=8 // pred_fallthru
          _
        // Predicated region
        $region32: #{custom-call.8} parent=8 // pred_check
          _
        $region33: #{custom-call.8} parent=8 // pred_check_branch
          %36 = sbr.rel target = $region35
        $region34: #{custom-call.8} parent=8 // pred_region
          _
        $region35: #{custom-call.8} parent=8 // pred_fallthru
          _
      $region9: #{custom-call.8} parent=4 // pred_fallthru
        _
      // Predicated region
      $region10: #{custom-call.8} parent=4 // pred_check
        _
      $region11: #{custom-call.8} parent=4 // pred_check_branch
        %7 = sbr.rel target = $region13
      $region12: #{custom-call.8} parent=4 // pred_region
        loop: start=0, step=1, limit=1
        $region14: #{custom-call.8} parent=12 // loop_pre_header
          _
        $region15: #{custom-call.8} parent=12 // loop_header
          %s10 = sphi 0, %s14
          %p11 = scmp.ge.s32.totalorder %s10, 1
          %s15 = sphi %s0, %s0
          %s16 = sphi [#allocation0], [#allocation0]
        $region16: #{custom-call.8} parent=12 // loop_header_branch
          %13 = sbr.rel (%p11) target = $region20
        $region17: #{custom-call.8} parent=12 // loop_body
          %v17 = vld [vmem:[%s15] sm:$0xff]
          %18 = vst [vmem:[%s16] sm:$0xff] %v17
          %v19 = vld [vmem:[%s15 + $0x8] sm:$0xff]
          %20 = vst [vmem:[%s16 + $0x8] sm:$0xff] %v19
        $region18: #{custom-call.8} parent=12 // loop_footer
          %s14 = sadd.s32 1, %s10
        $region19: #{custom-call.8} parent=12 // loop_footer_branch
          %9 = sbr.rel target = $region15
        $region20: #{custom-call.8} parent=12 // loop_exit
          _
      $region13: #{custom-call.8} parent=4 // pred_fallthru
        _
    $region5: #{custom-call.8} parent=1 // pred_fallthru
      _
    %37 = vnop
    %38 = vst [vmem:[#allocation1] sm:$0xff] 0.0
    %s39 = scalar_lea.vmem [#allocation1], 8
    %40 = vst [vmem:[%s39] sm:$0xff] 0.0
    %vm41 = vcmask 7168
    %v42 = vld [vmem:[#allocation1] ss:$0 sm:$0xff]
    %v43 = vld [vmem:[#allocation0] ss:$0 sm:$0xff]
    %v44 = vmul.f32 %v42, %v42
    %45 = vadd.xlane.f32.xlu0 %v44
    %v46 = vpop.xlane.xlu0 %45
    %v47 = vsub.f32 %v43, %v46
    %v48 = vrsqrt.pop %v47
    %v49 = vld [vmem:[#allocation0] sm:$0xff]
    %v50 = vld [vmem:[#allocation1] sm:$0xff]
    %v51 = vmul.f32 %v50, %v42
    %52 = vadd.xlane.f32.xlu0 %v51
    %v53 = vpop.xlane.xlu0 %52
    %v54 = vsub.f32 %v49, %v53
    %v55 = vmul.f32 %v54, %v48
    %v56 = vsel %vm41, %v55, 0.0
    %v57 = vadd.f32 %v50, %v56
    %58 = vst [vmem:[#allocation1] sm:$0xff] %v57
    %s59 = scalar_lea.vmem [#allocation0], 8
    %v60 = vld [vmem:[%s59] sm:$0xff]
    %s61 = scalar_lea.vmem [#allocation1], 8
    %v62 = vld [vmem:[%s61] sm:$0xff]
    %v63 = vmul.f32 %v62, %v42
    %64 = vadd.xlane.f32.xlu0 %v63
    %v65 = vpop.xlane.xlu0 %64
    %v66 = vsub.f32 %v60, %v65
    %v67 = vmul.f32 %v66, %v48
    %v68 = vsel %vm41, %v67, 0.0
    %v69 = vadd.f32 %v62, %v68
    %s70 = scalar_lea.vmem [#allocation1], 8
    %71 = vst [vmem:[%s70] sm:$0xff] %v69
    %vm72 = vcmask 15368
    %s73 = scalar_lea.vmem [#allocation1], 1
    %v74 = vld [vmem:[%s73] ss:$0 sm:$0xff]
    %s75 = scalar_lea.vmem [#allocation0], 1
    %v76 = vld [vmem:[%s75] ss:$0 sm:$0xff]
    %v77 = vmul.f32 %v74, %v74
    %78 = vadd.xlane.f32.xlu0 %v77
    %v79 = vpop.xlane.xlu0 %78
    %v80 = vsub.f32 %v76, %v79
    %v81 = vrsqrt.pop %v80
    %v82 = vld [vmem:[#allocation0] sm:$0xff]
    %v83 = vld [vmem:[#allocation1] sm:$0xff]
    %v84 = vmul.f32 %v83, %v74
    %85 = vadd.xlane.f32.xlu0 %v84
    %v86 = vpop.xlane.xlu0 %85
    %v87 = vsub.f32 %v82, %v86
    %v88 = vmul.f32 %v87, %v81
    %vm89 = vcmask 1047553
    %vm90 = vmand %vm72, %vm89
    %v91 = vsel %vm90, %v88, 0.0
    %v92 = vadd.f32 %v83, %v91
    %93 = vst [vmem:[#allocation1] sm:$0xff] %v92
    %s94 = scalar_lea.vmem [#allocation0], 8
    %v95 = vld [vmem:[%s94] sm:$0xff]
    %s96 = scalar_lea.vmem [#allocation1], 8
    %v97 = vld [vmem:[%s96] sm:$0xff]
    %v98 = vmul.f32 %v97, %v74
    %99 = vadd.xlane.f32.xlu0 %v98
    %v100 = vpop.xlane.xlu0 %99
    %v101 = vsub.f32 %v95, %v100
    %v102 = vmul.f32 %v101, %v81
    %v103 = vsel %vm72, %v102, 0.0
    %v104 = vadd.f32 %v97, %v103
    %s105 = scalar_lea.vmem [#allocation1], 8
    %106 = vst [vmem:[%s105] sm:$0xff] %v104
    %vm107 = vcmask 23568
    %s108 = scalar_lea.vmem [#allocation1], 2
    %v109 = vld [vmem:[%s108] ss:$0 sm:$0xff]
    %s110 = scalar_lea.vmem [#allocation0], 2
    %v111 = vld [vmem:[%s110] ss:$0 sm:$0xff]
    %v112 = vmul.f32 %v109, %v109
    %113 = vadd.xlane.f32.xlu0 %v112
    %v114 = vpop.xlane.xlu0 %113
    %v115 = vsub.f32 %v111, %v114
    %v116 = vrsqrt.pop %v115
    %v117 = vld [vmem:[#allocation0] sm:$0xff]
    %v118 = vld [vmem:[#allocation1] sm:$0xff]
    %v119 = vmul.f32 %v118, %v109
    %120 = vadd.xlane.f32.xlu0 %v119
    %v121 = vpop.xlane.xlu0 %120
    %v122 = vsub.f32 %v117, %v121
    %v123 = vmul.f32 %v122, %v116
    %vm124 = vcmask 1047554
    %vm125 = vmand %vm107, %vm124
    %v126 = vsel %vm125, %v123, 0.0
    %v127 = vadd.f32 %v118, %v126
    %128 = vst [vmem:[#allocation1] sm:$0xff] %v127
    %s129 = scalar_lea.vmem [#allocation0], 8
    %v130 = vld [vmem:[%s129] sm:$0xff]
    %s131 = scalar_lea.vmem [#allocation1], 8
    %v132 = vld [vmem:[%s131] sm:$0xff]
    %v133 = vmul.f32 %v132, %v109
    %134 = vadd.xlane.f32.xlu0 %v133
    %v135 = vpop.xlane.xlu0 %134
    %v136 = vsub.f32 %v130, %v135
    %v137 = vmul.f32 %v136, %v116
    %v138 = vsel %vm107, %v137, 0.0
    %v139 = vadd.f32 %v132, %v138
    %s140 = scalar_lea.vmem [#allocation1], 8
    %141 = vst [vmem:[%s140] sm:$0xff] %v139
    %vm142 = vcmask 31768
    %s143 = scalar_lea.vmem [#allocation1], 3
    %v144 = vld [vmem:[%s143] ss:$0 sm:$0xff]
    %s145 = scalar_lea.vmem [#allocation0], 3
    %v146 = vld [vmem:[%s145] ss:$0 sm:$0xff]
    %v147 = vmul.f32 %v144, %v144
    %148 = vadd.xlane.f32.xlu0 %v147
    %v149 = vpop.xlane.xlu0 %148
    %v150 = vsub.f32 %v146, %v149
    %v151 = vrsqrt.pop %v150
    %v152 = vld [vmem:[#allocation0] sm:$0xff]
    %v153 = vld [vmem:[#allocation1] sm:$0xff]
    %v154 = vmul.f32 %v153, %v144
    %155 = vadd.xlane.f32.xlu0 %v154
    %v156 = vpop.xlane.xlu0 %155
    %v157 = vsub.f32 %v152, %v156
    %v158 = vmul.f32 %v157, %v151
    %vm159 = vcmask 1047555
    %vm160 = vmand %vm142, %vm159
    %v161 = vsel %vm160, %v158, 0.0
    %v162 = vadd.f32 %v153, %v161
    %163 = vst [vmem:[#allocation1] sm:$0xff] %v162
    %s164 = scalar_lea.vmem [#allocation0], 8
    %v165 = vld [vmem:[%s164] sm:$0xff]
    %s166 = scalar_lea.vmem [#allocation1], 8
    %v167 = vld [vmem:[%s166] sm:$0xff]
    %v168 = vmul.f32 %v167, %v144
    %169 = vadd.xlane.f32.xlu0 %v168
    %v170 = vpop.xlane.xlu0 %169
    %v171 = vsub.f32 %v165, %v170
    %v172 = vmul.f32 %v171, %v151
    %v173 = vsel %vm142, %v172, 0.0
    %v174 = vadd.f32 %v167, %v173
    %s175 = scalar_lea.vmem [#allocation1], 8
    %176 = vst [vmem:[%s175] sm:$0xff] %v174
    %vm177 = vcmask 39968
    %s178 = scalar_lea.vmem [#allocation1], 4
    %v179 = vld [vmem:[%s178] ss:$0 sm:$0xff]
    %s180 = scalar_lea.vmem [#allocation0], 4
    %v181 = vld [vmem:[%s180] ss:$0 sm:$0xff]
    %v182 = vmul.f32 %v179, %v179
    %183 = vadd.xlane.f32.xlu0 %v182
    %v184 = vpop.xlane.xlu0 %183
    %v185 = vsub.f32 %v181, %v184
    %v186 = vrsqrt.pop %v185
    %v187 = vld [vmem:[#allocation0] sm:$0xff]
    %v188 = vld [vmem:[#allocation1] sm:$0xff]
    %v189 = vmul.f32 %v188, %v179
    %190 = vadd.xlane.f32.xlu0 %v189
    %v191 = vpop.xlane.xlu0 %190
    %v192 = vsub.f32 %v187, %v191
    %v193 = vmul.f32 %v192, %v186
    %vm194 = vcmask 1047556
    %vm195 = vmand %vm177, %vm194
    %v196 = vsel %vm195, %v193, 0.0
    %v197 = vadd.f32 %v188, %v196
    %198 = vst [vmem:[#allocation1] sm:$0xff] %v197
    %s199 = scalar_lea.vmem [#allocation0], 8
    %v200 = vld [vmem:[%s199] sm:$0xff]
    %s201 = scalar_lea.vmem [#allocation1], 8
    %v202 = vld [vmem:[%s201] sm:$0xff]
    %v203 = vmul.f32 %v202, %v179
    %204 = vadd.xlane.f32.xlu0 %v203
    %v205 = vpop.xlane.xlu0 %204
    %v206 = vsub.f32 %v200, %v205
    %v207 = vmul.f32 %v206, %v186
    %v208 = vsel %vm177, %v207, 0.0
    %v209 = vadd.f32 %v202, %v208
    %s210 = scalar_lea.vmem [#allocation1], 8
    %211 = vst [vmem:[%s210] sm:$0xff] %v209
    %vm212 = vcmask 48168
    %s213 = scalar_lea.vmem [#allocation1], 5
    %v214 = vld [vmem:[%s213] ss:$0 sm:$0xff]
    %s215 = scalar_lea.vmem [#allocation0], 5
    %v216 = vld [vmem:[%s215] ss:$0 sm:$0xff]
    %v217 = vmul.f32 %v214, %v214
    %218 = vadd.xlane.f32.xlu0 %v217
    %v219 = vpop.xlane.xlu0 %218
    %v220 = vsub.f32 %v216, %v219
    %v221 = vrsqrt.pop %v220
    %v222 = vld [vmem:[#allocation0] sm:$0xff]
    %v223 = vld [vmem:[#allocation1] sm:$0xff]
    %v224 = vmul.f32 %v223, %v214
    %225 = vadd.xlane.f32.xlu0 %v224
    %v226 = vpop.xlane.xlu0 %225
    %v227 = vsub.f32 %v222, %v226
    %v228 = vmul.f32 %v227, %v221
    %vm229 = vcmask 1047557
    %vm230 = vmand %vm212, %vm229
    %v231 = vsel %vm230, %v228, 0.0
    %v232 = vadd.f32 %v223, %v231
    %233 = vst [vmem:[#allocation1] sm:$0xff] %v232
    %s234 = scalar_lea.vmem [#allocation0], 8
    %v235 = vld [vmem:[%s234] sm:$0xff]
    %s236 = scalar_lea.vmem [#allocation1], 8
    %v237 = vld [vmem:[%s236] sm:$0xff]
    %v238 = vmul.f32 %v237, %v214
    %239 = vadd.xlane.f32.xlu0 %v238
    %v240 = vpop.xlane.xlu0 %239
    %v241 = vsub.f32 %v235, %v240
    %v242 = vmul.f32 %v241, %v221
    %v243 = vsel %vm212, %v242, 0.0
    %v244 = vadd.f32 %v237, %v243
    %s245 = scalar_lea.vmem [#allocation1], 8
    %246 = vst [vmem:[%s245] sm:$0xff] %v244
    %vm247 = vcmask 56368
    %s248 = scalar_lea.vmem [#allocation1], 6
    %v249 = vld [vmem:[%s248] ss:$0 sm:$0xff]
    %s250 = scalar_lea.vmem [#allocation0], 6
    %v251 = vld [vmem:[%s250] ss:$0 sm:$0xff]
    %v252 = vmul.f32 %v249, %v249
    %253 = vadd.xlane.f32.xlu0 %v252
    %v254 = vpop.xlane.xlu0 %253
    %v255 = vsub.f32 %v251, %v254
    %v256 = vrsqrt.pop %v255
    %v257 = vld [vmem:[#allocation0] sm:$0xff]
    %v258 = vld [vmem:[#allocation1] sm:$0xff]
    %v259 = vmul.f32 %v258, %v249
    %260 = vadd.xlane.f32.xlu0 %v259
    %v261 = vpop.xlane.xlu0 %260
    %v262 = vsub.f32 %v257, %v261
    %v263 = vmul.f32 %v262, %v256
    %vm264 = vcmask 1047558
    %vm265 = vmand %vm247, %vm264
    %v266 = vsel %vm265, %v263, 0.0
    %v267 = vadd.f32 %v258, %v266
    %268 = vst [vmem:[#allocation1] sm:$0xff] %v267
    %s269 = scalar_lea.vmem [#allocation0], 8
    %v270 = vld [vmem:[%s269] sm:$0xff]
    %s271 = scalar_lea.vmem [#allocation1], 8
    %v272 = vld [vmem:[%s271] sm:$0xff]
    %v273 = vmul.f32 %v272, %v249
    %274 = vadd.xlane.f32.xlu0 %v273
    %v275 = vpop.xlane.xlu0 %274
    %v276 = vsub.f32 %v270, %v275
    %v277 = vmul.f32 %v276, %v256
    %v278 = vsel %vm247, %v277, 0.0
    %v279 = vadd.f32 %v272, %v278
    %s280 = scalar_lea.vmem [#allocation1], 8
    %281 = vst [vmem:[%s280] sm:$0xff] %v279
    %vm282 = vcmask 64568
    %s283 = scalar_lea.vmem [#allocation1], 7
    %v284 = vld [vmem:[%s283] ss:$0 sm:$0xff]
    %s285 = scalar_lea.vmem [#allocation0], 7
    %v286 = vld [vmem:[%s285] ss:$0 sm:$0xff]
    %v287 = vmul.f32 %v284, %v284
    %288 = vadd.xlane.f32.xlu0 %v287
    %v289 = vpop.xlane.xlu0 %288
    %v290 = vsub.f32 %v286, %v289
    %v291 = vrsqrt.pop %v290
    %v292 = vld [vmem:[#allocation0] sm:$0xff]
    %v293 = vld [vmem:[#allocation1] sm:$0xff]
    %v294 = vmul.f32 %v293, %v284
    %295 = vadd.xlane.f32.xlu0 %v294
    %v296 = vpop.xlane.xlu0 %295
    %v297 = vsub.f32 %v292, %v296
    %v298 = vmul.f32 %v297, %v291
    %vm299 = vcmask 1047559
    %vm300 = vmand %vm282, %vm299
    %v301 = vsel %vm300, %v298, 0.0
    %v302 = vadd.f32 %v293, %v301
    %303 = vst [vmem:[#allocation1] sm:$0xff] %v302
    %s304 = scalar_lea.vmem [#allocation0], 8
    %v305 = vld [vmem:[%s304] sm:$0xff]
    %s306 = scalar_lea.vmem [#allocation1], 8
    %v307 = vld [vmem:[%s306] sm:$0xff]
    %v308 = vmul.f32 %v307, %v284
    %309 = vadd.xlane.f32.xlu0 %v308
    %v310 = vpop.xlane.xlu0 %309
    %v311 = vsub.f32 %v305, %v310
    %v312 = vmul.f32 %v311, %v291
    %v313 = vsel %vm282, %v312, 0.0
    %v314 = vadd.f32 %v307, %v313
    %s315 = scalar_lea.vmem [#allocation1], 8
    %316 = vst [vmem:[%s315] sm:$0xff] %v314
    %vm317 = vcmask 72768
    %s318 = scalar_lea.vmem [#allocation1], 8
    %v319 = vld [vmem:[%s318] ss:$0 sm:$0xff]
    %s320 = scalar_lea.vmem [#allocation0], 8
    %v321 = vld [vmem:[%s320] ss:$0 sm:$0xff]
    %v322 = vmul.f32 %v319, %v319
    %323 = vadd.xlane.f32.xlu0 %v322
    %v324 = vpop.xlane.xlu0 %323
    %v325 = vsub.f32 %v321, %v324
    %v326 = vrsqrt.pop %v325
    %s327 = scalar_lea.vmem [#allocation0], 8
    %v328 = vld [vmem:[%s327] sm:$0xff]
    %s329 = scalar_lea.vmem [#allocation1], 8
    %v330 = vld [vmem:[%s329] sm:$0xff]
    %v331 = vmul.f32 %v330, %v319
    %332 = vadd.xlane.f32.xlu0 %v331
    %v333 = vpop.xlane.xlu0 %332
    %v334 = vsub.f32 %v328, %v333
    %v335 = vmul.f32 %v334, %v326
    %v336 = vsel %vm317, %v335, 0.0
    %v337 = vadd.f32 %v330, %v336
    %s338 = scalar_lea.vmem [#allocation1], 8
    %339 = vst [vmem:[%s338] sm:$0xff] %v337
    %vm340 = vcmask 80968
    %s341 = scalar_lea.vmem [#allocation1], 9
    %v342 = vld [vmem:[%s341] ss:$0 sm:$0xff]
    %s343 = scalar_lea.vmem [#allocation0], 9
    %v344 = vld [vmem:[%s343] ss:$0 sm:$0xff]
    %v345 = vmul.f32 %v342, %v342
    %346 = vadd.xlane.f32.xlu0 %v345
    %v347 = vpop.xlane.xlu0 %346
    %v348 = vsub.f32 %v344, %v347
    %v349 = vrsqrt.pop %v348
    %s350 = scalar_lea.vmem [#allocation0], 8
    %v351 = vld [vmem:[%s350] sm:$0xff]
    %s352 = scalar_lea.vmem [#allocation1], 8
    %v353 = vld [vmem:[%s352] sm:$0xff]
    %v354 = vmul.f32 %v353, %v342
    %355 = vadd.xlane.f32.xlu0 %v354
    %v356 = vpop.xlane.xlu0 %355
    %v357 = vsub.f32 %v351, %v356
    %v358 = vmul.f32 %v357, %v349
    %vm359 = vcmask 1047553
    %vm360 = vmand %vm340, %vm359
    %v361 = vsel %vm360, %v358, 0.0
    %v362 = vadd.f32 %v353, %v361
    %s363 = scalar_lea.vmem [#allocation1], 8
    %364 = vst [vmem:[%s363] sm:$0xff] %v362
    %vm365 = vcmask 89168
    %s366 = scalar_lea.vmem [#allocation1], 10
    %v367 = vld [vmem:[%s366] ss:$0 sm:$0xff]
    %s368 = scalar_lea.vmem [#allocation0], 10
    %v369 = vld [vmem:[%s368] ss:$0 sm:$0xff]
    %v370 = vmul.f32 %v367, %v367
    %371 = vadd.xlane.f32.xlu0 %v370
    %v372 = vpop.xlane.xlu0 %371
    %v373 = vsub.f32 %v369, %v372
    %v374 = vrsqrt.pop %v373
    %s375 = scalar_lea.vmem [#allocation0], 8
    %v376 = vld [vmem:[%s375] sm:$0xff]
    %s377 = scalar_lea.vmem [#allocation1], 8
    %v378 = vld [vmem:[%s377] sm:$0xff]
    %v379 = vmul.f32 %v378, %v367
    %380 = vadd.xlane.f32.xlu0 %v379
    %v381 = vpop.xlane.xlu0 %380
    %v382 = vsub.f32 %v376, %v381
    %v383 = vmul.f32 %v382, %v374
    %vm384 = vcmask 1047554
    %vm385 = vmand %vm365, %vm384
    %v386 = vsel %vm385, %v383, 0.0
    %v387 = vadd.f32 %v378, %v386
    %s388 = scalar_lea.vmem [#allocation1], 8
    %389 = vst [vmem:[%s388] sm:$0xff] %v387
    %vm390 = vcmask 97368
    %s391 = scalar_lea.vmem [#allocation1], 11
    %v392 = vld [vmem:[%s391] ss:$0 sm:$0xff]
    %s393 = scalar_lea.vmem [#allocation0], 11
    %v394 = vld [vmem:[%s393] ss:$0 sm:$0xff]
    %v395 = vmul.f32 %v392, %v392
    %396 = vadd.xlane.f32.xlu0 %v395
    %v397 = vpop.xlane.xlu0 %396
    %v398 = vsub.f32 %v394, %v397
    %v399 = vrsqrt.pop %v398
    %s400 = scalar_lea.vmem [#allocation0], 8
    %v401 = vld [vmem:[%s400] sm:$0xff]
    %s402 = scalar_lea.vmem [#allocation1], 8
    %v403 = vld [vmem:[%s402] sm:$0xff]
    %v404 = vmul.f32 %v403, %v392
    %405 = vadd.xlane.f32.xlu0 %v404
    %v406 = vpop.xlane.xlu0 %405
    %v407 = vsub.f32 %v401, %v406
    %v408 = vmul.f32 %v407, %v399
    %vm409 = vcmask 1047555
    %vm410 = vmand %vm390, %vm409
    %v411 = vsel %vm410, %v408, 0.0
    %v412 = vadd.f32 %v403, %v411
    %s413 = scalar_lea.vmem [#allocation1], 8
    %414 = vst [vmem:[%s413] sm:$0xff] %v412
    %vm415 = vcmask 105568
    %s416 = scalar_lea.vmem [#allocation1], 12
    %v417 = vld [vmem:[%s416] ss:$0 sm:$0xff]
    %s418 = scalar_lea.vmem [#allocation0], 12
    %v419 = vld [vmem:[%s418] ss:$0 sm:$0xff]
    %v420 = vmul.f32 %v417, %v417
    %421 = vadd.xlane.f32.xlu0 %v420
    %v422 = vpop.xlane.xlu0 %421
    %v423 = vsub.f32 %v419, %v422
    %v424 = vrsqrt.pop %v423
    %s425 = scalar_lea.vmem [#allocation0], 8
    %v426 = vld [vmem:[%s425] sm:$0xff]
    %s427 = scalar_lea.vmem [#allocation1], 8
    %v428 = vld [vmem:[%s427] sm:$0xff]
    %v429 = vmul.f32 %v428, %v417
    %430 = vadd.xlane.f32.xlu0 %v429
    %v431 = vpop.xlane.xlu0 %430
    %v432 = vsub.f32 %v426, %v431
    %v433 = vmul.f32 %v432, %v424
    %vm434 = vcmask 1047556
    %vm435 = vmand %vm415, %vm434
    %v436 = vsel %vm435, %v433, 0.0
    %v437 = vadd.f32 %v428, %v436
    %s438 = scalar_lea.vmem [#allocation1], 8
    %439 = vst [vmem:[%s438] sm:$0xff] %v437
    %vm440 = vcmask 113768
    %s441 = scalar_lea.vmem [#allocation1], 13
    %v442 = vld [vmem:[%s441] ss:$0 sm:$0xff]
    %s443 = scalar_lea.vmem [#allocation0], 13
    %v444 = vld [vmem:[%s443] ss:$0 sm:$0xff]
    %v445 = vmul.f32 %v442, %v442
    %446 = vadd.xlane.f32.xlu0 %v445
    %v447 = vpop.xlane.xlu0 %446
    %v448 = vsub.f32 %v444, %v447
    %v449 = vrsqrt.pop %v448
    %s450 = scalar_lea.vmem [#allocation0], 8
    %v451 = vld [vmem:[%s450] sm:$0xff]
    %s452 = scalar_lea.vmem [#allocation1], 8
    %v453 = vld [vmem:[%s452] sm:$0xff]
    %v454 = vmul.f32 %v453, %v442
    %455 = vadd.xlane.f32.xlu0 %v454
    %v456 = vpop.xlane.xlu0 %455
    %v457 = vsub.f32 %v451, %v456
    %v458 = vmul.f32 %v457, %v449
    %vm459 = vcmask 1047557
    %vm460 = vmand %vm440, %vm459
    %v461 = vsel %vm460, %v458, 0.0
    %v462 = vadd.f32 %v453, %v461
    %s463 = scalar_lea.vmem [#allocation1], 8
    %464 = vst [vmem:[%s463] sm:$0xff] %v462
    %vm465 = vcmask 121968
    %s466 = scalar_lea.vmem [#allocation1], 14
    %v467 = vld [vmem:[%s466] ss:$0 sm:$0xff]
    %s468 = scalar_lea.vmem [#allocation0], 14
    %v469 = vld [vmem:[%s468] ss:$0 sm:$0xff]
    %v470 = vmul.f32 %v467, %v467
    %471 = vadd.xlane.f32.xlu0 %v470
    %v472 = vpop.xlane.xlu0 %471
    %v473 = vsub.f32 %v469, %v472
    %v474 = vrsqrt.pop %v473
    %s475 = scalar_lea.vmem [#allocation0], 8
    %v476 = vld [vmem:[%s475] sm:$0xff]
    %s477 = scalar_lea.vmem [#allocation1], 8
    %v478 = vld [vmem:[%s477] sm:$0xff]
    %v479 = vmul.f32 %v478, %v467
    %480 = vadd.xlane.f32.xlu0 %v479
    %v481 = vpop.xlane.xlu0 %480
    %v482 = vsub.f32 %v476, %v481
    %v483 = vmul.f32 %v482, %v474
    %vm484 = vcmask 1047558
    %vm485 = vmand %vm465, %vm484
    %v486 = vsel %vm485, %v483, 0.0
    %v487 = vadd.f32 %v478, %v486
    %s488 = scalar_lea.vmem [#allocation1], 8
    %489 = vst [vmem:[%s488] sm:$0xff] %v487
    %vm490 = vcmask 130168
    %s491 = scalar_lea.vmem [#allocation1], 15
    %v492 = vld [vmem:[%s491] ss:$0 sm:$0xff]
    %s493 = scalar_lea.vmem [#allocation0], 15
    %v494 = vld [vmem:[%s493] ss:$0 sm:$0xff]
    %v495 = vmul.f32 %v492, %v492
    %496 = vadd.xlane.f32.xlu0 %v495
    %v497 = vpop.xlane.xlu0 %496
    %v498 = vsub.f32 %v494, %v497
    %v499 = vrsqrt.pop %v498
    %s500 = scalar_lea.vmem [#allocation0], 8
    %v501 = vld [vmem:[%s500] sm:$0xff]
    %s502 = scalar_lea.vmem [#allocation1], 8
    %v503 = vld [vmem:[%s502] sm:$0xff]
    %v504 = vmul.f32 %v503, %v492
    %505 = vadd.xlane.f32.xlu0 %v504
    %v506 = vpop.xlane.xlu0 %505
    %v507 = vsub.f32 %v501, %v506
    %v508 = vmul.f32 %v507, %v499
    %vm509 = vcmask 1047559
    %vm510 = vmand %vm490, %vm509
    %v511 = vsel %vm510, %v508, 0.0
    %v512 = vadd.f32 %v503, %v511
    %s513 = scalar_lea.vmem [#allocation1], 8
    %514 = vst [vmem:[%s513] sm:$0xff] %v512
    // Predicated region
    $region36: #{custom-call.8} parent=1 // pred_check
      _
    $region37: #{custom-call.8} parent=1 // pred_check_branch
      %516 = sbr.rel (0) target = $region39
    $region38: #{custom-call.8} parent=1 // pred_region
      // Predicated region
      $region40: #{custom-call.8} parent=38 // pred_check
        _
      $region41: #{custom-call.8} parent=38 // pred_check_branch
        %518 = sbr.rel (0) target = $region43
      $region42: #{custom-call.8} parent=38 // pred_region
        // Predicated region
        $region55: #{custom-call.8} parent=42 // pred_check
          _
        $region56: #{custom-call.8} parent=42 // pred_check_branch
          %535 = sbr.rel (0) target = $region58
        $region57: #{custom-call.8} parent=42 // pred_region
          loop: start=0, step=1, limit=1
          $region59: #{custom-call.8} parent=57 // loop_pre_header
            _
          $region60: #{custom-call.8} parent=57 // loop_header
            %s537 = sphi 0, %s541
            %p538 = scmp.ge.s32.totalorder %s537, 1
            %s542 = sphi [#allocation1], [#allocation1]
            %s543 = sphi %s1, %s1
          $region61: #{custom-call.8} parent=57 // loop_header_branch
            %540 = sbr.rel (%p538) target = $region65
          $region62: #{custom-call.8} parent=57 // loop_body
            %v544 = vld [vmem:[%s542] sm:$0xff]
            %545 = vst [vmem:[%s543] sm:$0xff] %v544
            %v546 = vld [vmem:[%s542 + $0x8] sm:$0xff]
            %547 = vst [vmem:[%s543 + $0x8] sm:$0xff] %v546
          $region63: #{custom-call.8} parent=57 // loop_footer
            %s541 = sadd.s32 1, %s537
          $region64: #{custom-call.8} parent=57 // loop_footer_branch
            %536 = sbr.rel target = $region60
          $region65: #{custom-call.8} parent=57 // loop_exit
            _
        $region58: #{custom-call.8} parent=42 // pred_fallthru
          _
        // Predicated region
        $region66: #{custom-call.8} parent=42 // pred_check
          _
        $region67: #{custom-call.8} parent=42 // pred_check_branch
          %549 = sbr.rel target = $region69
        $region68: #{custom-call.8} parent=42 // pred_region
          _
        $region69: #{custom-call.8} parent=42 // pred_fallthru
          _
      $region43: #{custom-call.8} parent=38 // pred_fallthru
        _
      // Predicated region
      $region44: #{custom-call.8} parent=38 // pred_check
        _
      $region45: #{custom-call.8} parent=38 // pred_check_branch
        %520 = sbr.rel target = $region47
      $region46: #{custom-call.8} parent=38 // pred_region
        loop: start=0, step=1, limit=1
        $region48: #{custom-call.8} parent=46 // loop_pre_header
          _
        $region49: #{custom-call.8} parent=46 // loop_header
          %s523 = sphi 0, %s527
          %p524 = scmp.ge.s32.totalorder %s523, 1
          %s528 = sphi [#allocation1], [#allocation1]
          %s529 = sphi %s1, %s1
        $region50: #{custom-call.8} parent=46 // loop_header_branch
          %526 = sbr.rel (%p524) target = $region54
        $region51: #{custom-call.8} parent=46 // loop_body
          %v530 = vld [vmem:[%s528] sm:$0xff]
          %531 = vst [vmem:[%s529] sm:$0xff] %v530
          %v532 = vld [vmem:[%s528 + $0x8] sm:$0xff]
          %533 = vst [vmem:[%s529 + $0x8] sm:$0xff] %v532
        $region52: #{custom-call.8} parent=46 // loop_footer
          %s527 = sadd.s32 1, %s523
        $region53: #{custom-call.8} parent=46 // loop_footer_branch
          %522 = sbr.rel target = $region49
        $region54: #{custom-call.8} parent=46 // loop_exit
          _
      $region47: #{custom-call.8} parent=38 // pred_fallthru
        _
    $region39: #{custom-call.8} parent=1 // pred_fallthru
      _
    %550 = vnop

// kernel: custom-call.9
$region0: #{custom-call.9}
  %s0 = inlined_call_operand.vmem [shape: f32[1,16,16], index: 0, kind: input, shape index: {}]
  %s1 = inlined_call_operand.vmem [shape: f32[1,16,16], index: 1, kind: output, shape index: {}]
  $region1: #{custom-call.9} parent=0
    #allocation0 [shape = 'u8[8192]{0}', space=vmem, size = 0x2000, scoped, tag = 'operand span for operand 0']
    #allocation1 [shape = 'u8[8192]{0}', space=vmem, size = 0x2000, scoped, tag = 'operand span for operand 1']
    #allocation2 [shape = 'f32[16,16]{1,0}', space=vmem, size = 0x2000, scoped, tag = 'rescaled input a']
    // Predicated region
    $region2: #{custom-call.9} parent=1 // pred_check
      _
    $region3: #{custom-call.9} parent=1 // pred_check_branch
      %3 = sbr.rel (0) target = $region5
    $region4: #{custom-call.9} parent=1 // pred_region
      // Predicated region
      $region6: #{custom-call.9} parent=4 // pred_check
        _
      $region7: #{custom-call.9} parent=4 // pred_check_branch
        %5 = sbr.rel (0) target = $region9
      $region8: #{custom-call.9} parent=4 // pred_region
        // Predicated region
        $region21: #{custom-call.9} parent=8 // pred_check
          _
        $region22: #{custom-call.9} parent=8 // pred_check_branch
          %22 = sbr.rel (0) target = $region24
        $region23: #{custom-call.9} parent=8 // pred_region
          loop: start=0, step=1, limit=1
          $region25: #{custom-call.9} parent=23 // loop_pre_header
            _
          $region26: #{custom-call.9} parent=23 // loop_header
            %s24 = sphi 0, %s28
            %p25 = scmp.ge.s32.totalorder %s24, 1
            %s29 = sphi %s0, %s0
            %s30 = sphi [#allocation0], [#allocation0]
          $region27: #{custom-call.9} parent=23 // loop_header_branch
            %27 = sbr.rel (%p25) target = $region31
          $region28: #{custom-call.9} parent=23 // loop_body
            %v31 = vld [vmem:[%s29] sm:$0xff]
            %32 = vst [vmem:[%s30] sm:$0xff] %v31
            %v33 = vld [vmem:[%s29 + $0x8] sm:$0xff]
            %34 = vst [vmem:[%s30 + $0x8] sm:$0xff] %v33
          $region29: #{custom-call.9} parent=23 // loop_footer
            %s28 = sadd.s32 1, %s24
          $region30: #{custom-call.9} parent=23 // loop_footer_branch
            %23 = sbr.rel target = $region26
          $region31: #{custom-call.9} parent=23 // loop_exit
            _
        $region24: #{custom-call.9} parent=8 // pred_fallthru
          _
        // Predicated region
        $region32: #{custom-call.9} parent=8 // pred_check
          _
        $region33: #{custom-call.9} parent=8 // pred_check_branch
          %36 = sbr.rel target = $region35
        $region34: #{custom-call.9} parent=8 // pred_region
          _
        $region35: #{custom-call.9} parent=8 // pred_fallthru
          _
      $region9: #{custom-call.9} parent=4 // pred_fallthru
        _
      // Predicated region
      $region10: #{custom-call.9} parent=4 // pred_check
        _
      $region11: #{custom-call.9} parent=4 // pred_check_branch
        %7 = sbr.rel target = $region13
      $region12: #{custom-call.9} parent=4 // pred_region
        loop: start=0, step=1, limit=1
        $region14: #{custom-call.9} parent=12 // loop_pre_header
          _
        $region15: #{custom-call.9} parent=12 // loop_header
          %s10 = sphi 0, %s14
          %p11 = scmp.ge.s32.totalorder %s10, 1
          %s15 = sphi %s0, %s0
          %s16 = sphi [#allocation0], [#allocation0]
        $region16: #{custom-call.9} parent=12 // loop_header_branch
          %13 = sbr.rel (%p11) target = $region20
        $region17: #{custom-call.9} parent=12 // loop_body
          %v17 = vld [vmem:[%s15] sm:$0xff]
          %18 = vst [vmem:[%s16] sm:$0xff] %v17
          %v19 = vld [vmem:[%s15 + $0x8] sm:$0xff]
          %20 = vst [vmem:[%s16 + $0x8] sm:$0xff] %v19
        $region18: #{custom-call.9} parent=12 // loop_footer
          %s14 = sadd.s32 1, %s10
        $region19: #{custom-call.9} parent=12 // loop_footer_branch
          %9 = sbr.rel target = $region15
        $region20: #{custom-call.9} parent=12 // loop_exit
          _
      $region13: #{custom-call.9} parent=4 // pred_fallthru
        _
    $region5: #{custom-call.9} parent=1 // pred_fallthru
      _
    %37 = vnop
    %v38 = vlaneseq
    %v39 = vand.u32 %v38, 127
    %vm40 = vcmp.lt.s32.totalorder %v39, 16
    %v41 = vlaneseq
    %v42 = vshrl.u32 %v41, 7
    %vm44 = vcmp.eq.s32.totalorder %v42, %v39
    %v45 = vld [vmem:[#allocation0] sm:$0xff]
    %v46 = vsel %vm44, %v45, 0.0
    %47 = vadd.xlane.f32.xlu0 %v46
    %v48 = vpop.xlane.xlu0 %47
    %vm49 = vcmp.ge.s32.totalorder %v42, %v39
    %vm50 = vmand %vm49, %vm40
    %v51 = vsel %vm50, %v45, 0.0
    %v52 = vrcp.pop %v48
    %v53 = vmul.f32 %v51, %v52
    %54 = vst [vmem:[#allocation2] sm:$0xff] %v53
    %s55 = scalar_lea.vmem [#allocation0], 8
    %s56 = scalar_lea.vmem [#allocation2], 8
    %v57 = vlaneseq
    %v58 = vshrl.u32 %v57, 7
    %v59 = vadd.s32 %v58, 8
    %vm60 = vcmp.eq.s32.totalorder %v59, %v39
    %v61 = vld [vmem:[%s55] sm:$0xff]
    %v62 = vsel %vm60, %v61, 0.0
    %63 = vadd.xlane.f32.xlu0 %v62
    %v64 = vpop.xlane.xlu0 %63
    %vm65 = vcmp.ge.s32.totalorder %v59, %v39
    %vm66 = vmand %vm65, %vm40
    %v67 = vsel %vm66, %v61, 0.0
    %v68 = vrcp.pop %v64
    %v69 = vmul.f32 %v67, %v68
    %70 = vst [vmem:[%s56] sm:$0xff] %v69
    %v71 = vlaneseq
    %v72 = vand.u32 %v71, 127
    %v73 = vlaneseq
    %v74 = vshrl.u32 %v73, 7
    %vm76 = vcmp.eq.s32.totalorder %v72, %v74
    %v77 = vlaneseq
    %v78 = vand.u32 %v77, 127
    %vm79 = vcmp.eq.s32.totalorder %v78, 0
    %v80 = vsel %vm79, 1.0, -1.0
    %v81 = vsel %vm76, %v80, 0.0
    %v82 = vlaneseq
    %v83 = vand.u32 %v82, 127
    %v84 = vlaneseq
    %v85 = vshrl.u32 %v84, 7
    %v86 = vadd.s32 %v85, 8
    %vm87 = vcmp.eq.s32.totalorder %v83, %v86
    %v88 = vsel %vm87, -1.0, 0.0
    %s89 = scalar_lea.vmem [#allocation2], 1
    %v90 = vld [vmem:[%s89] ss:$0 sm:$0xff]
    %v91 = vxor.u32 %v90, 2147483648
    %v92 = vlaneseq
    %v93 = vand.u32 %v92, 127
    %vm94 = vcmp.eq.s32.totalorder %v93, 1
    %v95 = vmul.f32 %v91, %v81
    %96 = vadd.xlane.f32.xlu0 %v95
    %v97 = vpop.xlane.xlu0 %96
    %v98 = vsel %vm94, %v97, %v81
    %s99 = scalar_lea.vmem [#allocation2], 2
    %v100 = vld [vmem:[%s99] ss:$0 sm:$0xff]
    %v101 = vxor.u32 %v100, 2147483648
    %v102 = vlaneseq
    %v103 = vand.u32 %v102, 127
    %vm104 = vcmp.eq.s32.totalorder %v103, 2
    %v105 = vmul.f32 %v101, %v98
    %106 = vadd.xlane.f32.xlu0 %v105
    %v107 = vpop.xlane.xlu0 %106
    %v108 = vsel %vm104, %v107, %v98
    %s109 = scalar_lea.vmem [#allocation2], 3
    %v110 = vld [vmem:[%s109] ss:$0 sm:$0xff]
    %v111 = vxor.u32 %v110, 2147483648
    %v112 = vlaneseq
    %v113 = vand.u32 %v112, 127
    %vm114 = vcmp.eq.s32.totalorder %v113, 3
    %v115 = vmul.f32 %v111, %v108
    %116 = vadd.xlane.f32.xlu0 %v115
    %v117 = vpop.xlane.xlu0 %116
    %v118 = vsel %vm114, %v117, %v108
    %s119 = scalar_lea.vmem [#allocation2], 4
    %v120 = vld [vmem:[%s119] ss:$0 sm:$0xff]
    %v121 = vxor.u32 %v120, 2147483648
    %v122 = vlaneseq
    %v123 = vand.u32 %v122, 127
    %vm124 = vcmp.eq.s32.totalorder %v123, 4
    %v125 = vmul.f32 %v121, %v118
    %126 = vadd.xlane.f32.xlu0 %v125
    %v127 = vpop.xlane.xlu0 %126
    %v128 = vsel %vm124, %v127, %v118
    %s129 = scalar_lea.vmem [#allocation2], 5
    %v130 = vld [vmem:[%s129] ss:$0 sm:$0xff]
    %v131 = vxor.u32 %v130, 2147483648
    %v132 = vlaneseq
    %v133 = vand.u32 %v132, 127
    %vm134 = vcmp.eq.s32.totalorder %v133, 5
    %v135 = vmul.f32 %v131, %v128
    %136 = vadd.xlane.f32.xlu0 %v135
    %v137 = vpop.xlane.xlu0 %136
    %v138 = vsel %vm134, %v137, %v128
    %s139 = scalar_lea.vmem [#allocation2], 6
    %v140 = vld [vmem:[%s139] ss:$0 sm:$0xff]
    %v141 = vxor.u32 %v140, 2147483648
    %v142 = vlaneseq
    %v143 = vand.u32 %v142, 127
    %vm144 = vcmp.eq.s32.totalorder %v143, 6
    %v145 = vmul.f32 %v141, %v138
    %146 = vadd.xlane.f32.xlu0 %v145
    %v147 = vpop.xlane.xlu0 %146
    %v148 = vsel %vm144, %v147, %v138
    %s149 = scalar_lea.vmem [#allocation2], 7
    %v150 = vld [vmem:[%s149] ss:$0 sm:$0xff]
    %v151 = vxor.u32 %v150, 2147483648
    %v152 = vlaneseq
    %v153 = vand.u32 %v152, 127
    %vm154 = vcmp.eq.s32.totalorder %v153, 7
    %v155 = vmul.f32 %v151, %v148
    %156 = vadd.xlane.f32.xlu0 %v155
    %v157 = vpop.xlane.xlu0 %156
    %v158 = vsel %vm154, %v157, %v148
    %s159 = scalar_lea.vmem [#allocation2], 8
    %v160 = vld [vmem:[%s159] ss:$0 sm:$0xff]
    %v161 = vxor.u32 %v160, 2147483648
    %v162 = vlaneseq
    %v163 = vand.u32 %v162, 127
    %vm164 = vcmp.eq.s32.totalorder %v163, 8
    %v165 = vmul.f32 %v161, %v158
    %166 = vadd.xlane.f32.xlu0 %v165
    %v167 = vpop.xlane.xlu0 %166
    %v168 = vsel %vm164, %v167, %v158
    %v169 = vmul.f32 %v161, %v88
    %170 = vadd.xlane.f32.xlu0 %v169
    %v171 = vpop.xlane.xlu0 %170
    %v172 = vsel %vm164, %v171, %v88
    %s173 = scalar_lea.vmem [#allocation2], 9
    %v174 = vld [vmem:[%s173] ss:$0 sm:$0xff]
    %v175 = vxor.u32 %v174, 2147483648
    %v176 = vlaneseq
    %v177 = vand.u32 %v176, 127
    %vm178 = vcmp.eq.s32.totalorder %v177, 9
    %v179 = vmul.f32 %v175, %v168
    %180 = vadd.xlane.f32.xlu0 %v179
    %v181 = vpop.xlane.xlu0 %180
    %v182 = vsel %vm178, %v181, %v168
    %v183 = vmul.f32 %v175, %v172
    %184 = vadd.xlane.f32.xlu0 %v183
    %v185 = vpop.xlane.xlu0 %184
    %v186 = vsel %vm178, %v185, %v172
    %s187 = scalar_lea.vmem [#allocation2], 10
    %v188 = vld [vmem:[%s187] ss:$0 sm:$0xff]
    %v189 = vxor.u32 %v188, 2147483648
    %v190 = vlaneseq
    %v191 = vand.u32 %v190, 127
    %vm192 = vcmp.eq.s32.totalorder %v191, 10
    %v193 = vmul.f32 %v189, %v182
    %194 = vadd.xlane.f32.xlu0 %v193
    %v195 = vpop.xlane.xlu0 %194
    %v196 = vsel %vm192, %v195, %v182
    %v197 = vmul.f32 %v189, %v186
    %198 = vadd.xlane.f32.xlu0 %v197
    %v199 = vpop.xlane.xlu0 %198
    %v200 = vsel %vm192, %v199, %v186
    %s201 = scalar_lea.vmem [#allocation2], 11
    %v202 = vld [vmem:[%s201] ss:$0 sm:$0xff]
    %v203 = vxor.u32 %v202, 2147483648
    %v204 = vlaneseq
    %v205 = vand.u32 %v204, 127
    %vm206 = vcmp.eq.s32.totalorder %v205, 11
    %v207 = vmul.f32 %v203, %v196
    %208 = vadd.xlane.f32.xlu0 %v207
    %v209 = vpop.xlane.xlu0 %208
    %v210 = vsel %vm206, %v209, %v196
    %v211 = vmul.f32 %v203, %v200
    %212 = vadd.xlane.f32.xlu0 %v211
    %v213 = vpop.xlane.xlu0 %212
    %v214 = vsel %vm206, %v213, %v200
    %s215 = scalar_lea.vmem [#allocation2], 12
    %v216 = vld [vmem:[%s215] ss:$0 sm:$0xff]
    %v217 = vxor.u32 %v216, 2147483648
    %v218 = vlaneseq
    %v219 = vand.u32 %v218, 127
    %vm220 = vcmp.eq.s32.totalorder %v219, 12
    %v221 = vmul.f32 %v217, %v210
    %222 = vadd.xlane.f32.xlu0 %v221
    %v223 = vpop.xlane.xlu0 %222
    %v224 = vsel %vm220, %v223, %v210
    %v225 = vmul.f32 %v217, %v214
    %226 = vadd.xlane.f32.xlu0 %v225
    %v227 = vpop.xlane.xlu0 %226
    %v228 = vsel %vm220, %v227, %v214
    %s229 = scalar_lea.vmem [#allocation2], 13
    %v230 = vld [vmem:[%s229] ss:$0 sm:$0xff]
    %v231 = vxor.u32 %v230, 2147483648
    %v232 = vlaneseq
    %v233 = vand.u32 %v232, 127
    %vm234 = vcmp.eq.s32.totalorder %v233, 13
    %v235 = vmul.f32 %v231, %v224
    %236 = vadd.xlane.f32.xlu0 %v235
    %v237 = vpop.xlane.xlu0 %236
    %v238 = vsel %vm234, %v237, %v224
    %v239 = vmul.f32 %v231, %v228
    %240 = vadd.xlane.f32.xlu0 %v239
    %v241 = vpop.xlane.xlu0 %240
    %v242 = vsel %vm234, %v241, %v228
    %s243 = scalar_lea.vmem [#allocation2], 14
    %v244 = vld [vmem:[%s243] ss:$0 sm:$0xff]
    %v245 = vxor.u32 %v244, 2147483648
    %v246 = vlaneseq
    %v247 = vand.u32 %v246, 127
    %vm248 = vcmp.eq.s32.totalorder %v247, 14
    %v249 = vmul.f32 %v245, %v238
    %250 = vadd.xlane.f32.xlu0 %v249
    %v251 = vpop.xlane.xlu0 %250
    %v252 = vsel %vm248, %v251, %v238
    %v253 = vmul.f32 %v245, %v242
    %254 = vadd.xlane.f32.xlu0 %v253
    %v255 = vpop.xlane.xlu0 %254
    %v256 = vsel %vm248, %v255, %v242
    %s257 = scalar_lea.vmem [#allocation2], 15
    %v258 = vld [vmem:[%s257] ss:$0 sm:$0xff]
    %v259 = vxor.u32 %v258, 2147483648
    %v260 = vlaneseq
    %v261 = vand.u32 %v260, 127
    %vm262 = vcmp.eq.s32.totalorder %v261, 15
    %v263 = vmul.f32 %v259, %v252
    %264 = vadd.xlane.f32.xlu0 %v263
    %v265 = vpop.xlane.xlu0 %264
    %v266 = vsel %vm262, %v265, %v252
    %v267 = vmul.f32 %v259, %v256
    %268 = vadd.xlane.f32.xlu0 %v267
    %v269 = vpop.xlane.xlu0 %268
    %v270 = vsel %vm262, %v269, %v256
    %v271 = vrcp.pop %v48
    %v272 = vmul.f32 %v266, %v271
    %vm273 = vweird.f32 %v48
    %v274 = vsel %vm273, %v266, %v272
    %275 = vst [vmem:[#allocation1] sm:$0xff] %v274
    %v276 = vrcp.pop %v64
    %v277 = vmul.f32 %v270, %v276
    %vm278 = vweird.f32 %v64
    %v279 = vsel %vm278, %v270, %v277
    %s280 = scalar_lea.vmem [#allocation1], 8
    %281 = vst [vmem:[%s280] sm:$0xff] %v279
    // Predicated region
    $region36: #{custom-call.9} parent=1 // pred_check
      _
    $region37: #{custom-call.9} parent=1 // pred_check_branch
      %283 = sbr.rel (0) target = $region39
    $region38: #{custom-call.9} parent=1 // pred_region
      // Predicated region
      $region40: #{custom-call.9} parent=38 // pred_check
        _
      $region41: #{custom-call.9} parent=38 // pred_check_branch
        %285 = sbr.rel (0) target = $region43
      $region42: #{custom-call.9} parent=38 // pred_region
        // Predicated region
        $region55: #{custom-call.9} parent=42 // pred_check
          _
        $region56: #{custom-call.9} parent=42 // pred_check_branch
          %302 = sbr.rel (0) target = $region58
        $region57: #{custom-call.9} parent=42 // pred_region
          loop: start=0, step=1, limit=1
          $region59: #{custom-call.9} parent=57 // loop_pre_header
            _
          $region60: #{custom-call.9} parent=57 // loop_header
            %s304 = sphi 0, %s308
            %p305 = scmp.ge.s32.totalorder %s304, 1
            %s309 = sphi [#allocation1], [#allocation1]
            %s310 = sphi %s1, %s1
          $region61: #{custom-call.9} parent=57 // loop_header_branch
            %307 = sbr.rel (%p305) target = $region65
          $region62: #{custom-call.9} parent=57 // loop_body
            %v311 = vld [vmem:[%s309] sm:$0xff]
            %312 = vst [vmem:[%s310] sm:$0xff] %v311
            %v313 = vld [vmem:[%s309 + $0x8] sm:$0xff]
            %314 = vst [vmem:[%s310 + $0x8] sm:$0xff] %v313
          $region63: #{custom-call.9} parent=57 // loop_footer
            %s308 = sadd.s32 1, %s304
          $region64: #{custom-call.9} parent=57 // loop_footer_branch
            %303 = sbr.rel target = $region60
          $region65: #{custom-call.9} parent=57 // loop_exit
            _
        $region58: #{custom-call.9} parent=42 // pred_fallthru
          _
        // Predicated region
        $region66: #{custom-call.9} parent=42 // pred_check
          _
        $region67: #{custom-call.9} parent=42 // pred_check_branch
          %316 = sbr.rel target = $region69
        $region68: #{custom-call.9} parent=42 // pred_region
          _
        $region69: #{custom-call.9} parent=42 // pred_fallthru
          _
      $region43: #{custom-call.9} parent=38 // pred_fallthru
        _
      // Predicated region
      $region44: #{custom-call.9} parent=38 // pred_check
        _
      $region45: #{custom-call.9} parent=38 // pred_check_branch
        %287 = sbr.rel target = $region47
      $region46: #{custom-call.9} parent=38 // pred_region
        loop: start=0, step=1, limit=1
        $region48: #{custom-call.9} parent=46 // loop_pre_header
          _
        $region49: #{custom-call.9} parent=46 // loop_header
          %s290 = sphi 0, %s294
          %p291 = scmp.ge.s32.totalorder %s290, 1
          %s295 = sphi [#allocation1], [#allocation1]
          %s296 = sphi %s1, %s1
        $region50: #{custom-call.9} parent=46 // loop_header_branch
          %293 = sbr.rel (%p291) target = $region54
        $region51: #{custom-call.9} parent=46 // loop_body
          %v297 = vld [vmem:[%s295] sm:$0xff]
          %298 = vst [vmem:[%s296] sm:$0xff] %v297
          %v299 = vld [vmem:[%s295 + $0x8] sm:$0xff]
          %300 = vst [vmem:[%s296 + $0x8] sm:$0xff] %v299
        $region52: #{custom-call.9} parent=46 // loop_footer
          %s294 = sadd.s32 1, %s290
        $region53: #{custom-call.9} parent=46 // loop_footer_branch
          %289 = sbr.rel target = $region49
        $region54: #{custom-call.9} parent=46 // loop_exit
          _
      $region47: #{custom-call.9} parent=38 // pred_fallthru
        _
    $region39: #{custom-call.9} parent=1 // pred_fallthru
      _
    %317 = vnop

// kernel: squeeze.3
$region0: #{squeeze.3}
  %s0 = inlined_call_operand.vmem [shape: f32[16], index: 0, kind: input, shape index: {}]
  %s1 = inlined_call_operand.vmem [shape: f32[2,8], index: 1, kind: output, shape index: {}]
  $region1: #{squeeze.3} parent=0
    #allocation0 [shape = 'u8[4096]{0}', space=vmem, size = 0x1000, scoped, tag = 'scoped mem for output reshape']
    #allocation1 [shape = 'u8[4096]{0}', space=vmem, size = 0x1000, scoped, tag = 'scoped mem for input reshape']
    %s3 = sshllo.u32 0, 1
    %v4 = vld [vmem:[%s0] sm:%s3]
    %5 = vst [vmem:[#allocation1] sm:%s3] %v4
    %v6 = vld [vmem:[#allocation1] sm:$0x1]
    %vm7 = vcmask 64512
    %8 = vst.msk [vmem:[#allocation0] sm:$0x1] %vm7, %v6
    %v9 = vld [vmem:[#allocation1] sm:$0x1]
    %10 = vrot.lane.b32.xlu0 %v9, 120
    %v11 = vpop.permute.xlu0 %10
    %vm12 = vcmask 64512
    %s13 = scalar_lea.vmem [#allocation0], 1
    %14 = vst.msk [vmem:[%s13] sm:$0x1] %vm12, %v11
    %s16 = sshllo.u32 0, 2
    %v18 = vld [vmem:[#allocation0] sm:%s16]
    %s19 = sshllo.u32 0, 2
    %20 = vst [vmem:[%s1] sm:%s19] %v18

// kernel: deep_gp_forward.3
$region0: #{deep_gp_forward.3}
  #allocation0 [shape = 'u32[]', space=smem, size = 0x4, offset = 0x4, fixed_abs, tag = 'smem constant byte address 0x4 - core index']
  #allocation1 [shape = 'u32[144,128]{1,0:T(1,128)}', space=vmem, size = 0x12000, scoped, tag = 'internal scratch']
  #allocation2 [shape = 'f32[1]{0:T(128)S(6)}', space=smem, size = 0x200, scoped, tag = 'scoped memory for deep_gp_forward.3']
  %s0 = inlined_call_operand.<no memory space> [shape: f32[1], index: 0, kind: input, shape index: {}]
  %s1 = inlined_call_operand.vmem [shape: f32[16,8], index: 1, kind: input, shape index: {}]
  %s2 = inlined_call_operand.vmem [shape: f32[1,8], index: 2, kind: input, shape index: {}]
  %s3 = inlined_call_operand.vmem [shape: f32[16,1], index: 3, kind: input, shape index: {}]
  %s4 = inlined_call_operand.vmem [shape: f32[16,1], index: 4, kind: input, shape index: {}]
  %s5 = inlined_call_operand.vmem [shape: f32[16,16], index: 5, kind: input, shape index: {}]
  %s6 = inlined_call_operand.vmem [shape: f32[128,8], index: 6, kind: input, shape index: {}]
  %s7 = inlined_call_operand.vmem [shape: f32[2,128], index: 7, kind: output, shape index: {}]
  %s8 = sld [smem:[#allocation0]]
  $region38: #{deep_gp_forward.3} parent=0
    _
  %s10 = ssub.s32 1, %s8
  %s11 = scalar_select 0, %s10, %s8
  %12 = sst [smem:[#allocation2]] %s0
  // Predicated region
  $region2: #{deep_gp_forward.3} parent=0 // pred_check
    _
  $region3: #{deep_gp_forward.3} parent=0 // pred_check_branch
    %14 = sbr.rel (0) target = $region5
  $region4: #{deep_gp_forward.3} parent=0 // pred_region
    _
  $region5: #{deep_gp_forward.3} parent=0 // pred_fallthru
    _
  // Predicated region
  $region6: #{deep_gp_forward.3} parent=0 // pred_check
    _
  $region7: #{deep_gp_forward.3} parent=0 // pred_check_branch
    %16 = sbr.rel (0) target = $region9
  $region8: #{deep_gp_forward.3} parent=0 // pred_region
    _
  $region9: #{deep_gp_forward.3} parent=0 // pred_fallthru
    _
  // Predicated region
  $region10: #{deep_gp_forward.3} parent=0 // pred_check
    _
  $region11: #{deep_gp_forward.3} parent=0 // pred_check_branch
    %18 = sbr.rel (0) target = $region13
  $region12: #{deep_gp_forward.3} parent=0 // pred_region
    _
  $region13: #{deep_gp_forward.3} parent=0 // pred_fallthru
    _
  // Predicated region
  $region14: #{deep_gp_forward.3} parent=0 // pred_check
    _
  $region15: #{deep_gp_forward.3} parent=0 // pred_check_branch
    %20 = sbr.rel (0) target = $region17
  $region16: #{deep_gp_forward.3} parent=0 // pred_region
    _
  $region17: #{deep_gp_forward.3} parent=0 // pred_fallthru
    _
  // Predicated region
  $region18: #{deep_gp_forward.3} parent=0 // pred_check
    _
  $region19: #{deep_gp_forward.3} parent=0 // pred_check_branch
    %22 = sbr.rel (0) target = $region21
  $region20: #{deep_gp_forward.3} parent=0 // pred_region
    _
  $region21: #{deep_gp_forward.3} parent=0 // pred_fallthru
    _
  // Predicated region
  $region22: #{deep_gp_forward.3} parent=0 // pred_check
    _
  $region23: #{deep_gp_forward.3} parent=0 // pred_check_branch
    %24 = sbr.rel (0) target = $region25
  $region24: #{deep_gp_forward.3} parent=0 // pred_region
    _
  $region25: #{deep_gp_forward.3} parent=0 // pred_fallthru
    _
  // Predicated region
  $region26: #{deep_gp_forward.3} parent=0 // pred_check
    _
  $region27: #{deep_gp_forward.3} parent=0 // pred_check_branch
    %26 = sbr.rel (0) target = $region29
  $region28: #{deep_gp_forward.3} parent=0 // pred_region
    _
  $region29: #{deep_gp_forward.3} parent=0 // pred_fallthru
    _
  %s27 = sld [smem:[#allocation2]]
  %v28 = vld [vmem:[%s6] sm:$0xff]
  %v29 = vld [vmem:[%s6 + $0x8] sm:$0xff]
  %v30 = vld [vmem:[%s6 + $0x10] sm:$0xff]
  %v31 = vld [vmem:[%s6 + $0x18] sm:$0xff]
  %v32 = vld [vmem:[%s6 + $0x20] sm:$0xff]
  %v33 = vld [vmem:[%s6 + $0x28] sm:$0xff]
  %v34 = vld [vmem:[%s6 + $0x30] sm:$0xff]
  %v35 = vld [vmem:[%s6 + $0x38] sm:$0xff]
  %v36 = vld [vmem:[%s6 + $0x40] sm:$0xff]
  %v37 = vld [vmem:[%s6 + $0x48] sm:$0xff]
  %v38 = vld [vmem:[%s6 + $0x50] sm:$0xff]
  %v39 = vld [vmem:[%s6 + $0x58] sm:$0xff]
  %v40 = vld [vmem:[%s6 + $0x60] sm:$0xff]
  %v41 = vld [vmem:[%s6 + $0x68] sm:$0xff]
  %v42 = vld [vmem:[%s6 + $0x70] sm:$0xff]
  %v43 = vld [vmem:[%s6 + $0x78] sm:$0xff]
  %v44 = vld [vmem:[%s1] sm:$0xff]
  %v45 = vld [vmem:[%s1 + $0x8] sm:$0xff]
  %v46 = vld [vmem:[%s2] sm:$0x1]
  %v47 = vmul.f32 %v28, %v28
  %v48 = vmul.f32 %v29, %v29
  %v49 = vmul.f32 %v30, %v30
  %v50 = vmul.f32 %v31, %v31
  %v51 = vmul.f32 %v32, %v32
  %v52 = vmul.f32 %v33, %v33
  %v53 = vmul.f32 %v34, %v34
  %v54 = vmul.f32 %v35, %v35
  %v55 = vmul.f32 %v36, %v36
  %v56 = vmul.f32 %v37, %v37
  %v57 = vmul.f32 %v38, %v38
  %v58 = vmul.f32 %v39, %v39
  %v59 = vmul.f32 %v40, %v40
  %v60 = vmul.f32 %v41, %v41
  %v61 = vmul.f32 %v42, %v42
  %v62 = vmul.f32 %v43, %v43
  %vm63 = vcmask 64512
  %v65 = vsel %vm63, %v46, 0
  %v68 = vsel %vm63, %v47, 0
  %v71 = vsel %vm63, %v48, 0
  %v74 = vsel %vm63, %v49, 0
  %v77 = vsel %vm63, %v50, 0
  %v80 = vsel %vm63, %v51, 0
  %v83 = vsel %vm63, %v52, 0
  %v86 = vsel %vm63, %v53, 0
  %v89 = vsel %vm63, %v54, 0
  %v92 = vsel %vm63, %v55, 0
  %v95 = vsel %vm63, %v56, 0
  %v98 = vsel %vm63, %v57, 0
  %v101 = vsel %vm63, %v58, 0
  %v104 = vsel %vm63, %v59, 0
  %v107 = vsel %vm63, %v60, 0
  %v110 = vsel %vm63, %v61, 0
  %v113 = vsel %vm63, %v62, 0
  %115 = vmatprep.subr.mxu0 0.0
  %116 = vmatpush1.xpose.msra.mxu0 %v68
  %117 = vmatprep.subr.mxu0 0.0
  %118 = vmatpush1.xpose.msra.mxu0 %v71
  %119 = vmatprep.subr.mxu0 0.0
  %120 = vmatpush1.xpose.msra.mxu0 %v74
  %121 = vmatprep.subr.mxu0 0.0
  %122 = vmatpush1.xpose.msra.mxu0 %v77
  %123 = vmatprep.subr.mxu0 0.0
  %124 = vmatpush1.xpose.msra.mxu0 %v80
  %125 = vmatprep.subr.mxu0 0.0
  %126 = vmatpush1.xpose.msra.mxu0 %v83
  %127 = vmatprep.subr.mxu0 0.0
  %128 = vmatpush1.xpose.msra.mxu0 %v86
  %129 = vmatprep.subr.mxu0 0.0
  %130 = vmatpush1.xpose.msra.mxu0 %v89
  %131 = vmatprep.subr.mxu0 0.0
  %132 = vmatpush1.xpose.msra.mxu0 %v92
  %133 = vmatprep.subr.mxu0 0.0
  %134 = vmatpush1.xpose.msra.mxu0 %v95
  %135 = vmatprep.subr.mxu0 0.0
  %136 = vmatpush1.xpose.msra.mxu0 %v98
  %137 = vmatprep.subr.mxu0 0.0
  %138 = vmatpush1.xpose.msra.mxu0 %v101
  %139 = vmatprep.subr.mxu0 0.0
  %140 = vmatpush1.xpose.msra.mxu0 %v104
  %141 = vmatprep.subr.mxu0 0.0
  %142 = vmatpush1.xpose.msra.mxu0 %v107
  %143 = vmatprep.subr.mxu0 0.0
  %144 = vmatpush1.xpose.msra.mxu0 %v110
  %145 = vmatprep.subr.mxu0 0.0
  %146 = vmatpush1.xpose.msra.mxu0 %v113
  %147 = vmatprep.subr.mxu0 0.0
  %148 = vmatpush1.xpose.msra.mxu0 0.0
  %149 = vmatprep.subr.mxu0 0.0
  %150 = vmatpush1.xpose.msra.mxu0 0.0
  %151 = vmatprep.subr.mxu0 0.0
  %152 = vmatpush1.xpose.msra.mxu0 0.0
  %153 = vmatprep.subr.mxu0 0.0
  %154 = vmatpush1.xpose.msra.mxu0 0.0
  %155 = vmatprep.subr.mxu0 0.0
  %156 = vmatpush1.xpose.msra.mxu0 0.0
  %157 = vmatprep.subr.mxu0 0.0
  %158 = vmatpush1.xpose.msra.mxu0 0.0
  %159 = vmatprep.subr.mxu0 0.0
  %160 = vmatpush1.xpose.msra.mxu0 0.0
  %161 = vmatprep.subr.mxu0 0.0
  %162 = vmatpush1.xpose.msra.mxu0 0.0
  %163 = vmatprep.subr.mxu0 0.0
  %164 = vmatpush1.xpose.msra.mxu0 0.0
  %165 = vmatprep.subr.mxu0 0.0
  %166 = vmatpush1.xpose.msra.mxu0 0.0
  %167 = vmatprep.subr.mxu0 0.0
  %168 = vmatpush1.xpose.msra.mxu0 0.0
  %169 = vmatprep.subr.mxu0 0.0
  %170 = vmatpush1.xpose.msra.mxu0 0.0
  %171 = vmatprep.subr.mxu0 0.0
  %172 = vmatpush1.xpose.msra.mxu0 0.0
  %173 = vmatprep.subr.mxu0 0.0
  %174 = vmatpush1.xpose.msra.mxu0 0.0
  %175 = vmatprep.subr.mxu0 0.0
  %176 = vmatpush1.xpose.msra.mxu0 0.0
  %177 = vmatprep.subr.mxu0 0.0
  %178 = vmatpush1.xpose.msra.mxu0 0.0
  %179 = vmatprep.mubr.f32.mxu0 0.0
  %180 = vmatmul.mubr.f32.gmra.mrb[0].mxu0 %v65
  %v181 = vpop.f32.mrb[0].mxu0
  %v182 = vadd.f32 0.0, %v181
  %v183 = vpop.f32.mrb[0].mxu0
  %184 = vdwg.mxu0
  %v185 = vld [vmem:[%s3] sm:$0xff]
  %v186 = vld [vmem:[%s3 + $0x8] sm:$0xff]
  %188 = vset.pattern.permute.xlu0 0
  %189 = vperm.xlu0 %188, %v185
  %v190 = vpop.permute.xlu0 %189
  %193 = vset.pattern.permute.xlu0 0
  %194 = vperm.xlu0 %193, %v186
  %v195 = vpop.permute.xlu0 %194
  %v198 = vsel %vm63, %v44, 0
  %v201 = vsel %vm63, %v45, 0
  %v204 = vsel %vm63, %v28, 0
  %v207 = vsel %vm63, %v29, 0
  %v210 = vsel %vm63, %v30, 0
  %v213 = vsel %vm63, %v31, 0
  %v216 = vsel %vm63, %v32, 0
  %v219 = vsel %vm63, %v33, 0
  %v222 = vsel %vm63, %v34, 0
  %v225 = vsel %vm63, %v35, 0
  %v228 = vsel %vm63, %v36, 0
  %v231 = vsel %vm63, %v37, 0
  %v234 = vsel %vm63, %v38, 0
  %v237 = vsel %vm63, %v39, 0
  %v240 = vsel %vm63, %v40, 0
  %v243 = vsel %vm63, %v41, 0
  %v246 = vsel %vm63, %v42, 0
  %v249 = vsel %vm63, %v43, 0
  %251 = vmatprep.subr.mxu0 0.0
  %252 = vmatpush1.xpose.msra.mxu0 %v204
  %253 = vmatprep.subr.mxu0 0.0
  %254 = vmatpush1.xpose.msra.mxu0 %v207
  %255 = vmatprep.subr.mxu0 0.0
  %256 = vmatpush1.xpose.msra.mxu0 %v210
  %257 = vmatprep.subr.mxu0 0.0
  %258 = vmatpush1.xpose.msra.mxu0 %v213
  %259 = vmatprep.subr.mxu0 0.0
  %260 = vmatpush1.xpose.msra.mxu0 %v216
  %261 = vmatprep.subr.mxu0 0.0
  %262 = vmatpush1.xpose.msra.mxu0 %v219
  %263 = vmatprep.subr.mxu0 0.0
  %264 = vmatpush1.xpose.msra.mxu0 %v222
  %265 = vmatprep.subr.mxu0 0.0
  %266 = vmatpush1.xpose.msra.mxu0 %v225
  %267 = vmatprep.subr.mxu0 0.0
  %268 = vmatpush1.xpose.msra.mxu0 %v228
  %269 = vmatprep.subr.mxu0 0.0
  %270 = vmatpush1.xpose.msra.mxu0 %v231
  %271 = vmatprep.subr.mxu0 0.0
  %272 = vmatpush1.xpose.msra.mxu0 %v234
  %273 = vmatprep.subr.mxu0 0.0
  %274 = vmatpush1.xpose.msra.mxu0 %v237
  %275 = vmatprep.subr.mxu0 0.0
  %276 = vmatpush1.xpose.msra.mxu0 %v240
  %277 = vmatprep.subr.mxu0 0.0
  %278 = vmatpush1.xpose.msra.mxu0 %v243
  %279 = vmatprep.subr.mxu0 0.0
  %280 = vmatpush1.xpose.msra.mxu0 %v246
  %281 = vmatprep.subr.mxu0 0.0
  %282 = vmatpush1.xpose.msra.mxu0 %v249
  %283 = vmatprep.subr.mxu0 0.0
  %284 = vmatpush1.xpose.msra.mxu0 0.0
  %285 = vmatprep.subr.mxu0 0.0
  %286 = vmatpush1.xpose.msra.mxu0 0.0
  %287 = vmatprep.subr.mxu0 0.0
  %288 = vmatpush1.xpose.msra.mxu0 0.0
  %289 = vmatprep.subr.mxu0 0.0
  %290 = vmatpush1.xpose.msra.mxu0 0.0
  %291 = vmatprep.subr.mxu0 0.0
  %292 = vmatpush1.xpose.msra.mxu0 0.0
  %293 = vmatprep.subr.mxu0 0.0
  %294 = vmatpush1.xpose.msra.mxu0 0.0
  %295 = vmatprep.subr.mxu0 0.0
  %296 = vmatpush1.xpose.msra.mxu0 0.0
  %297 = vmatprep.subr.mxu0 0.0
  %298 = vmatpush1.xpose.msra.mxu0 0.0
  %299 = vmatprep.subr.mxu0 0.0
  %300 = vmatpush1.xpose.msra.mxu0 0.0
  %301 = vmatprep.subr.mxu0 0.0
  %302 = vmatpush1.xpose.msra.mxu0 0.0
  %303 = vmatprep.subr.mxu0 0.0
  %304 = vmatpush1.xpose.msra.mxu0 0.0
  %305 = vmatprep.subr.mxu0 0.0
  %306 = vmatpush1.xpose.msra.mxu0 0.0
  %307 = vmatprep.subr.mxu0 0.0
  %308 = vmatpush1.xpose.msra.mxu0 0.0
  %309 = vmatprep.subr.mxu0 0.0
  %310 = vmatpush1.xpose.msra.mxu0 0.0
  %311 = vmatprep.subr.mxu0 0.0
  %312 = vmatpush1.xpose.msra.mxu0 0.0
  %313 = vmatprep.subr.mxu0 0.0
  %314 = vmatpush1.xpose.msra.mxu0 0.0
  %315 = vmatprep.mubr.f32.mxu0 0.0
  %316 = vmatmul.mubr.f32.gmra.mrb[0].mxu0 %v198
  %v317 = vpop.f32.mrb[0].mxu0
  %v318 = vadd.f32 %v190, %v317
  %v319 = vpop.f32.mrb[0].mxu0
  %320 = vmatprep.mubr.f32.mxu0 0.0
  %321 = vmatmul.mubr.f32.gmra.mrb[0].mxu0 %v201
  %v322 = vpop.f32.mrb[0].mxu0
  %v323 = vadd.f32 %v195, %v322
  %v324 = vpop.f32.mrb[0].mxu0
  %325 = vdwg.mxu0
  %v326 = vlaneseq
  %v327 = vshrl.u32 %v326, 7
  %v328 = vsub.s32 0, %v327
  %v329 = vrot.slane %v182, %v328
  %v330 = vadd.f32 %v318, %v329
  %v331 = vadd.f32 %v323, %v329
  %v332 = vmul.f32 %v330, 1.442695
  %v333 = vpow.pop %v332
  %v334 = vmul.f32 %v331, 1.442695
  %v335 = vpow.pop %v334
  %v336 = vstv %s27
  %v337 = vmin.f32 %v333, %v336
  %v338 = vmin.f32 %v335, %v336
  %v339 = vld [vmem:[%s4] sm:$0xff]
  %v340 = vld [vmem:[%s4 + $0x8] sm:$0xff]
  %342 = vset.pattern.permute.xlu0 0
  %343 = vperm.xlu0 %342, %v339
  %v344 = vpop.permute.xlu0 %343
  %347 = vset.pattern.permute.xlu0 0
  %348 = vperm.xlu0 %347, %v340
  %v349 = vpop.permute.xlu0 %348
  %v351 = vmul.f32 %v344, %v337
  %v352 = vmul.f32 %v349, %v338
  %v353 = vadd.f32 %v351, %v352
  %v354 = vrot.slane %v353, 4
  %v355 = vadd.f32 %v353, %v354
  %v356 = vrot.slane %v355, 2
  %v357 = vadd.f32 %v355, %v356
  %v358 = vrot.slane %v357, 1
  %v359 = vadd.f32 %v357, %v358
  %v360 = vld [vmem:[%s5] sm:$0xff]
  %v361 = vld [vmem:[%s5 + $0x8] sm:$0xff]
  %vm362 = vcmask 130048
  %v364 = vsel %vm362, %v360, 0
  %v367 = vsel %vm362, %v361, 0
  %369 = vmatprep.subr.mxu0 0.0
  %370 = vmatpush1.msra.mxu0 %v337
  %371 = vmatprep.subr.mxu0 0.0
  %372 = vmatpush1.msra.mxu0 %v338
  %373 = vmatprep.subr.mxu0 0.0
  %374 = vmatpush1.msra.mxu0 0.0
  %375 = vmatprep.subr.mxu0 0.0
  %376 = vmatpush1.msra.mxu0 0.0
  %377 = vmatprep.subr.mxu0 0.0
  %378 = vmatpush1.msra.mxu0 0.0
  %379 = vmatprep.subr.mxu0 0.0
  %380 = vmatpush1.msra.mxu0 0.0
  %381 = vmatprep.subr.mxu0 0.0
  %382 = vmatpush1.msra.mxu0 0.0
  %383 = vmatprep.subr.mxu0 0.0
  %384 = vmatpush1.msra.mxu0 0.0
  %385 = vmatprep.subr.mxu0 0.0
  %386 = vmatpush1.msra.mxu0 0.0
  %387 = vmatprep.subr.mxu0 0.0
  %388 = vmatpush1.msra.mxu0 0.0
  %389 = vmatprep.subr.mxu0 0.0
  %390 = vmatpush1.msra.mxu0 0.0
  %391 = vmatprep.subr.mxu0 0.0
  %392 = vmatpush1.msra.mxu0 0.0
  %393 = vmatprep.subr.mxu0 0.0
  %394 = vmatpush1.msra.mxu0 0.0
  %395 = vmatprep.subr.mxu0 0.0
  %396 = vmatpush1.msra.mxu0 0.0
  %397 = vmatprep.subr.mxu0 0.0
  %398 = vmatpush1.msra.mxu0 0.0
  %399 = vmatprep.subr.mxu0 0.0
  %400 = vmatpush1.msra.mxu0 0.0
  %401 = vmatprep.subr.mxu0 0.0
  %402 = vmatpush1.msra.mxu0 0.0
  %403 = vmatprep.subr.mxu0 0.0
  %404 = vmatpush1.msra.mxu0 0.0
  %405 = vmatprep.subr.mxu0 0.0
  %406 = vmatpush1.msra.mxu0 0.0
  %407 = vmatprep.subr.mxu0 0.0
  %408 = vmatpush1.msra.mxu0 0.0
  %409 = vmatprep.subr.mxu0 0.0
  %410 = vmatpush1.msra.mxu0 0.0
  %411 = vmatprep.subr.mxu0 0.0
  %412 = vmatpush1.msra.mxu0 0.0
  %413 = vmatprep.subr.mxu0 0.0
  %414 = vmatpush1.msra.mxu0 0.0
  %415 = vmatprep.subr.mxu0 0.0
  %416 = vmatpush1.msra.mxu0 0.0
  %417 = vmatprep.subr.mxu0 0.0
  %418 = vmatpush1.msra.mxu0 0.0
  %419 = vmatprep.subr.mxu0 0.0
  %420 = vmatpush1.msra.mxu0 0.0
  %421 = vmatprep.subr.mxu0 0.0
  %422 = vmatpush1.msra.mxu0 0.0
  %423 = vmatprep.subr.mxu0 0.0
  %424 = vmatpush1.msra.mxu0 0.0
  %425 = vmatprep.subr.mxu0 0.0
  %426 = vmatpush1.msra.mxu0 0.0
  %427 = vmatprep.subr.mxu0 0.0
  %428 = vmatpush1.msra.mxu0 0.0
  %429 = vmatprep.subr.mxu0 0.0
  %430 = vmatpush1.msra.mxu0 0.0
  %431 = vmatprep.subr.mxu0 0.0
  %432 = vmatpush1.msra.mxu0 0.0
  %433 = vmatprep.mubr.f32.mxu0 0.0
  %434 = vmatmul.mubr.f32.gmra.mrb[0].mxu0 %v364
  %v435 = vpop.f32.mrb[0].mxu0
  %v436 = vadd.f32 0.0, %v435
  %v437 = vpop.f32.mrb[0].mxu0
  %438 = vmatprep.mubr.f32.mxu0 0.0
  %439 = vmatmul.mubr.f32.gmra.mrb[0].mxu0 %v367
  %v440 = vpop.f32.mrb[0].mxu0
  %v441 = vadd.f32 0.0, %v440
  %v442 = vpop.f32.mrb[0].mxu0
  %443 = vdwg.mxu0
  %v444 = vmul.f32 %v436, %v337
  %v445 = vmul.f32 %v441, %v338
  %v446 = vadd.f32 %v444, %v445
  %v447 = vrot.slane %v446, 4
  %v448 = vadd.f32 %v446, %v447
  %v449 = vrot.slane %v448, 2
  %v450 = vadd.f32 %v448, %v449
  %v451 = vrot.slane %v450, 1
  %v452 = vadd.f32 %v450, %v451
  %v453 = vadd.f32 %v336, %v452
  %vm454 = vcmask 1040384
  %v455 = vsel %vm454, %v359, %v453
  %456 = vst [vmem:[%s7] sm:$0x3] %v455
  // Predicated region
  $region30: #{deep_gp_forward.3} parent=0 // pred_check
    _
  $region31: #{deep_gp_forward.3} parent=0 // pred_check_branch
    %458 = sbr.rel (0) target = $region33
  $region32: #{deep_gp_forward.3} parent=0 // pred_region
    _
  $region33: #{deep_gp_forward.3} parent=0 // pred_fallthru
    _
  // Predicated region
  $region34: #{deep_gp_forward.3} parent=0 // pred_check
    _
  $region35: #{deep_gp_forward.3} parent=0 // pred_check_branch
    %460 = sbr.rel (0) target = $region37
  $region36: #{deep_gp_forward.3} parent=0 // pred_region
    _
  $region37: #{deep_gp_forward.3} parent=0 // pred_fallthru
    _

// kernel: deep_gp_forward.2
$region0: #{deep_gp_forward.2}
  #allocation0 [shape = 'u32[]', space=smem, size = 0x4, offset = 0x4, fixed_abs, tag = 'smem constant byte address 0x4 - core index']
  #allocation1 [shape = 'u32[144,128]{1,0:T(1,128)}', space=vmem, size = 0x12000, scoped, tag = 'internal scratch']
  #allocation2 [shape = 'f32[1]{0:T(128)S(6)}', space=smem, size = 0x200, scoped, tag = 'scoped memory for deep_gp_forward.2']
  %s0 = inlined_call_operand.<no memory space> [shape: f32[1], index: 0, kind: input, shape index: {}]
  %s1 = inlined_call_operand.vmem [shape: f32[16,16], index: 1, kind: input, shape index: {}]
  %s2 = inlined_call_operand.vmem [shape: f32[1,16], index: 2, kind: input, shape index: {}]
  %s3 = inlined_call_operand.vmem [shape: f32[16,1], index: 3, kind: input, shape index: {}]
  %s4 = inlined_call_operand.vmem [shape: f32[16,1], index: 4, kind: input, shape index: {}]
  %s5 = inlined_call_operand.vmem [shape: f32[16,16], index: 5, kind: input, shape index: {}]
  %s6 = inlined_call_operand.vmem [shape: f32[128,16], index: 6, kind: input, shape index: {}]
  %s7 = inlined_call_operand.vmem [shape: f32[2,128], index: 7, kind: output, shape index: {}]
  %s8 = sld [smem:[#allocation0]]
  $region38: #{deep_gp_forward.2} parent=0
    _
  %s10 = ssub.s32 1, %s8
  %s11 = scalar_select 0, %s10, %s8
  %12 = sst [smem:[#allocation2]] %s0
  // Predicated region
  $region2: #{deep_gp_forward.2} parent=0 // pred_check
    _
  $region3: #{deep_gp_forward.2} parent=0 // pred_check_branch
    %14 = sbr.rel (0) target = $region5
  $region4: #{deep_gp_forward.2} parent=0 // pred_region
    _
  $region5: #{deep_gp_forward.2} parent=0 // pred_fallthru
    _
  // Predicated region
  $region6: #{deep_gp_forward.2} parent=0 // pred_check
    _
  $region7: #{deep_gp_forward.2} parent=0 // pred_check_branch
    %16 = sbr.rel (0) target = $region9
  $region8: #{deep_gp_forward.2} parent=0 // pred_region
    _
  $region9: #{deep_gp_forward.2} parent=0 // pred_fallthru
    _
  // Predicated region
  $region10: #{deep_gp_forward.2} parent=0 // pred_check
    _
  $region11: #{deep_gp_forward.2} parent=0 // pred_check_branch
    %18 = sbr.rel (0) target = $region13
  $region12: #{deep_gp_forward.2} parent=0 // pred_region
    _
  $region13: #{deep_gp_forward.2} parent=0 // pred_fallthru
    _
  // Predicated region
  $region14: #{deep_gp_forward.2} parent=0 // pred_check
    _
  $region15: #{deep_gp_forward.2} parent=0 // pred_check_branch
    %20 = sbr.rel (0) target = $region17
  $region16: #{deep_gp_forward.2} parent=0 // pred_region
    _
  $region17: #{deep_gp_forward.2} parent=0 // pred_fallthru
    _
  // Predicated region
  $region18: #{deep_gp_forward.2} parent=0 // pred_check
    _
  $region19: #{deep_gp_forward.2} parent=0 // pred_check_branch
    %22 = sbr.rel (0) target = $region21
  $region20: #{deep_gp_forward.2} parent=0 // pred_region
    _
  $region21: #{deep_gp_forward.2} parent=0 // pred_fallthru
    _
  // Predicated region
  $region22: #{deep_gp_forward.2} parent=0 // pred_check
    _
  $region23: #{deep_gp_forward.2} parent=0 // pred_check_branch
    %24 = sbr.rel (0) target = $region25
  $region24: #{deep_gp_forward.2} parent=0 // pred_region
    _
  $region25: #{deep_gp_forward.2} parent=0 // pred_fallthru
    _
  // Predicated region
  $region26: #{deep_gp_forward.2} parent=0 // pred_check
    _
  $region27: #{deep_gp_forward.2} parent=0 // pred_check_branch
    %26 = sbr.rel (0) target = $region29
  $region28: #{deep_gp_forward.2} parent=0 // pred_region
    _
  $region29: #{deep_gp_forward.2} parent=0 // pred_fallthru
    _
  %s27 = sld [smem:[#allocation2]]
  %v28 = vld [vmem:[%s6] sm:$0xff]
  %v29 = vld [vmem:[%s6 + $0x8] sm:$0xff]
  %v30 = vld [vmem:[%s6 + $0x10] sm:$0xff]
  %v31 = vld [vmem:[%s6 + $0x18] sm:$0xff]
  %v32 = vld [vmem:[%s6 + $0x20] sm:$0xff]
  %v33 = vld [vmem:[%s6 + $0x28] sm:$0xff]
  %v34 = vld [vmem:[%s6 + $0x30] sm:$0xff]
  %v35 = vld [vmem:[%s6 + $0x38] sm:$0xff]
  %v36 = vld [vmem:[%s6 + $0x40] sm:$0xff]
  %v37 = vld [vmem:[%s6 + $0x48] sm:$0xff]
  %v38 = vld [vmem:[%s6 + $0x50] sm:$0xff]
  %v39 = vld [vmem:[%s6 + $0x58] sm:$0xff]
  %v40 = vld [vmem:[%s6 + $0x60] sm:$0xff]
  %v41 = vld [vmem:[%s6 + $0x68] sm:$0xff]
  %v42 = vld [vmem:[%s6 + $0x70] sm:$0xff]
  %v43 = vld [vmem:[%s6 + $0x78] sm:$0xff]
  %v44 = vld [vmem:[%s1] sm:$0xff]
  %v45 = vld [vmem:[%s1 + $0x8] sm:$0xff]
  %v46 = vld [vmem:[%s2] sm:$0x1]
  %v47 = vmul.f32 %v28, %v28
  %v48 = vmul.f32 %v29, %v29
  %v49 = vmul.f32 %v30, %v30
  %v50 = vmul.f32 %v31, %v31
  %v51 = vmul.f32 %v32, %v32
  %v52 = vmul.f32 %v33, %v33
  %v53 = vmul.f32 %v34, %v34
  %v54 = vmul.f32 %v35, %v35
  %v55 = vmul.f32 %v36, %v36
  %v56 = vmul.f32 %v37, %v37
  %v57 = vmul.f32 %v38, %v38
  %v58 = vmul.f32 %v39, %v39
  %v59 = vmul.f32 %v40, %v40
  %v60 = vmul.f32 %v41, %v41
  %v61 = vmul.f32 %v42, %v42
  %v62 = vmul.f32 %v43, %v43
  %vm63 = vcmask 130048
  %v65 = vsel %vm63, %v46, 0
  %v68 = vsel %vm63, %v47, 0
  %v71 = vsel %vm63, %v48, 0
  %v74 = vsel %vm63, %v49, 0
  %v77 = vsel %vm63, %v50, 0
  %v80 = vsel %vm63, %v51, 0
  %v83 = vsel %vm63, %v52, 0
  %v86 = vsel %vm63, %v53, 0
  %v89 = vsel %vm63, %v54, 0
  %v92 = vsel %vm63, %v55, 0
  %v95 = vsel %vm63, %v56, 0
  %v98 = vsel %vm63, %v57, 0
  %v101 = vsel %vm63, %v58, 0
  %v104 = vsel %vm63, %v59, 0
  %v107 = vsel %vm63, %v60, 0
  %v110 = vsel %vm63, %v61, 0
  %v113 = vsel %vm63, %v62, 0
  %115 = vmatprep.subr.mxu0 0.0
  %116 = vmatpush1.xpose.msra.mxu0 %v68
  %117 = vmatprep.subr.mxu0 0.0
  %118 = vmatpush1.xpose.msra.mxu0 %v71
  %119 = vmatprep.subr.mxu0 0.0
  %120 = vmatpush1.xpose.msra.mxu0 %v74
  %121 = vmatprep.subr.mxu0 0.0
  %122 = vmatpush1.xpose.msra.mxu0 %v77
  %123 = vmatprep.subr.mxu0 0.0
  %124 = vmatpush1.xpose.msra.mxu0 %v80
  %125 = vmatprep.subr.mxu0 0.0
  %126 = vmatpush1.xpose.msra.mxu0 %v83
  %127 = vmatprep.subr.mxu0 0.0
  %128 = vmatpush1.xpose.msra.mxu0 %v86
  %129 = vmatprep.subr.mxu0 0.0
  %130 = vmatpush1.xpose.msra.mxu0 %v89
  %131 = vmatprep.subr.mxu0 0.0
  %132 = vmatpush1.xpose.msra.mxu0 %v92
  %133 = vmatprep.subr.mxu0 0.0
  %134 = vmatpush1.xpose.msra.mxu0 %v95
  %135 = vmatprep.subr.mxu0 0.0
  %136 = vmatpush1.xpose.msra.mxu0 %v98
  %137 = vmatprep.subr.mxu0 0.0
  %138 = vmatpush1.xpose.msra.mxu0 %v101
  %139 = vmatprep.subr.mxu0 0.0
  %140 = vmatpush1.xpose.msra.mxu0 %v104
  %141 = vmatprep.subr.mxu0 0.0
  %142 = vmatpush1.xpose.msra.mxu0 %v107
  %143 = vmatprep.subr.mxu0 0.0
  %144 = vmatpush1.xpose.msra.mxu0 %v110
  %145 = vmatprep.subr.mxu0 0.0
  %146 = vmatpush1.xpose.msra.mxu0 %v113
  %147 = vmatprep.subr.mxu0 0.0
  %148 = vmatpush1.xpose.msra.mxu0 0.0
  %149 = vmatprep.subr.mxu0 0.0
  %150 = vmatpush1.xpose.msra.mxu0 0.0
  %151 = vmatprep.subr.mxu0 0.0
  %152 = vmatpush1.xpose.msra.mxu0 0.0
  %153 = vmatprep.subr.mxu0 0.0
  %154 = vmatpush1.xpose.msra.mxu0 0.0
  %155 = vmatprep.subr.mxu0 0.0
  %156 = vmatpush1.xpose.msra.mxu0 0.0
  %157 = vmatprep.subr.mxu0 0.0
  %158 = vmatpush1.xpose.msra.mxu0 0.0
  %159 = vmatprep.subr.mxu0 0.0
  %160 = vmatpush1.xpose.msra.mxu0 0.0
  %161 = vmatprep.subr.mxu0 0.0
  %162 = vmatpush1.xpose.msra.mxu0 0.0
  %163 = vmatprep.subr.mxu0 0.0
  %164 = vmatpush1.xpose.msra.mxu0 0.0
  %165 = vmatprep.subr.mxu0 0.0
  %166 = vmatpush1.xpose.msra.mxu0 0.0
  %167 = vmatprep.subr.mxu0 0.0
  %168 = vmatpush1.xpose.msra.mxu0 0.0
  %169 = vmatprep.subr.mxu0 0.0
  %170 = vmatpush1.xpose.msra.mxu0 0.0
  %171 = vmatprep.subr.mxu0 0.0
  %172 = vmatpush1.xpose.msra.mxu0 0.0
  %173 = vmatprep.subr.mxu0 0.0
  %174 = vmatpush1.xpose.msra.mxu0 0.0
  %175 = vmatprep.subr.mxu0 0.0
  %176 = vmatpush1.xpose.msra.mxu0 0.0
  %177 = vmatprep.subr.mxu0 0.0
  %178 = vmatpush1.xpose.msra.mxu0 0.0
  %179 = vmatprep.mubr.f32.mxu0 0.0
  %180 = vmatmul.mubr.f32.gmra.mrb[0].mxu0 %v65
  %v181 = vpop.f32.mrb[0].mxu0
  %v182 = vadd.f32 0.0, %v181
  %v183 = vpop.f32.mrb[0].mxu0
  %184 = vdwg.mxu0
  %v185 = vld [vmem:[%s3] sm:$0xff]
  %v186 = vld [vmem:[%s3 + $0x8] sm:$0xff]
  %188 = vset.pattern.permute.xlu0 0
  %189 = vperm.xlu0 %188, %v185
  %v190 = vpop.permute.xlu0 %189
  %193 = vset.pattern.permute.xlu0 0
  %194 = vperm.xlu0 %193, %v186
  %v195 = vpop.permute.xlu0 %194
  %v198 = vsel %vm63, %v44, 0
  %v201 = vsel %vm63, %v45, 0
  %v204 = vsel %vm63, %v28, 0
  %v207 = vsel %vm63, %v29, 0
  %v210 = vsel %vm63, %v30, 0
  %v213 = vsel %vm63, %v31, 0
  %v216 = vsel %vm63, %v32, 0
  %v219 = vsel %vm63, %v33, 0
  %v222 = vsel %vm63, %v34, 0
  %v225 = vsel %vm63, %v35, 0
  %v228 = vsel %vm63, %v36, 0
  %v231 = vsel %vm63, %v37, 0
  %v234 = vsel %vm63, %v38, 0
  %v237 = vsel %vm63, %v39, 0
  %v240 = vsel %vm63, %v40, 0
  %v243 = vsel %vm63, %v41, 0
  %v246 = vsel %vm63, %v42, 0
  %v249 = vsel %vm63, %v43, 0
  %251 = vmatprep.subr.mxu0 0.0
  %252 = vmatpush1.xpose.msra.mxu0 %v204
  %253 = vmatprep.subr.mxu0 0.0
  %254 = vmatpush1.xpose.msra.mxu0 %v207
  %255 = vmatprep.subr.mxu0 0.0
  %256 = vmatpush1.xpose.msra.mxu0 %v210
  %257 = vmatprep.subr.mxu0 0.0
  %258 = vmatpush1.xpose.msra.mxu0 %v213
  %259 = vmatprep.subr.mxu0 0.0
  %260 = vmatpush1.xpose.msra.mxu0 %v216
  %261 = vmatprep.subr.mxu0 0.0
  %262 = vmatpush1.xpose.msra.mxu0 %v219
  %263 = vmatprep.subr.mxu0 0.0
  %264 = vmatpush1.xpose.msra.mxu0 %v222
  %265 = vmatprep.subr.mxu0 0.0
  %266 = vmatpush1.xpose.msra.mxu0 %v225
  %267 = vmatprep.subr.mxu0 0.0
  %268 = vmatpush1.xpose.msra.mxu0 %v228
  %269 = vmatprep.subr.mxu0 0.0
  %270 = vmatpush1.xpose.msra.mxu0 %v231
  %271 = vmatprep.subr.mxu0 0.0
  %272 = vmatpush1.xpose.msra.mxu0 %v234
  %273 = vmatprep.subr.mxu0 0.0
  %274 = vmatpush1.xpose.msra.mxu0 %v237
  %275 = vmatprep.subr.mxu0 0.0
  %276 = vmatpush1.xpose.msra.mxu0 %v240
  %277 = vmatprep.subr.mxu0 0.0
  %278 = vmatpush1.xpose.msra.mxu0 %v243
  %279 = vmatprep.subr.mxu0 0.0
  %280 = vmatpush1.xpose.msra.mxu0 %v246
  %281 = vmatprep.subr.mxu0 0.0
  %282 = vmatpush1.xpose.msra.mxu0 %v249
  %283 = vmatprep.subr.mxu0 0.0
  %284 = vmatpush1.xpose.msra.mxu0 0.0
  %285 = vmatprep.subr.mxu0 0.0
  %286 = vmatpush1.xpose.msra.mxu0 0.0
  %287 = vmatprep.subr.mxu0 0.0
  %288 = vmatpush1.xpose.msra.mxu0 0.0
  %289 = vmatprep.subr.mxu0 0.0
  %290 = vmatpush1.xpose.msra.mxu0 0.0
  %291 = vmatprep.subr.mxu0 0.0
  %292 = vmatpush1.xpose.msra.mxu0 0.0
  %293 = vmatprep.subr.mxu0 0.0
  %294 = vmatpush1.xpose.msra.mxu0 0.0
  %295 = vmatprep.subr.mxu0 0.0
  %296 = vmatpush1.xpose.msra.mxu0 0.0
  %297 = vmatprep.subr.mxu0 0.0
  %298 = vmatpush1.xpose.msra.mxu0 0.0
  %299 = vmatprep.subr.mxu0 0.0
  %300 = vmatpush1.xpose.msra.mxu0 0.0
  %301 = vmatprep.subr.mxu0 0.0
  %302 = vmatpush1.xpose.msra.mxu0 0.0
  %303 = vmatprep.subr.mxu0 0.0
  %304 = vmatpush1.xpose.msra.mxu0 0.0
  %305 = vmatprep.subr.mxu0 0.0
  %306 = vmatpush1.xpose.msra.mxu0 0.0
  %307 = vmatprep.subr.mxu0 0.0
  %308 = vmatpush1.xpose.msra.mxu0 0.0
  %309 = vmatprep.subr.mxu0 0.0
  %310 = vmatpush1.xpose.msra.mxu0 0.0
  %311 = vmatprep.subr.mxu0 0.0
  %312 = vmatpush1.xpose.msra.mxu0 0.0
  %313 = vmatprep.subr.mxu0 0.0
  %314 = vmatpush1.xpose.msra.mxu0 0.0
  %315 = vmatprep.mubr.f32.mxu0 0.0
  %316 = vmatmul.mubr.f32.gmra.mrb[0].mxu0 %v198
  %v317 = vpop.f32.mrb[0].mxu0
  %v318 = vadd.f32 %v190, %v317
  %v319 = vpop.f32.mrb[0].mxu0
  %320 = vmatprep.mubr.f32.mxu0 0.0
  %321 = vmatmul.mubr.f32.gmra.mrb[0].mxu0 %v201
  %v322 = vpop.f32.mrb[0].mxu0
  %v323 = vadd.f32 %v195, %v322
  %v324 = vpop.f32.mrb[0].mxu0
  %325 = vdwg.mxu0
  %v326 = vlaneseq
  %v327 = vshrl.u32 %v326, 7
  %v328 = vsub.s32 0, %v327
  %v329 = vrot.slane %v182, %v328
  %v330 = vadd.f32 %v318, %v329
  %v331 = vadd.f32 %v323, %v329
  %v332 = vmul.f32 %v330, 1.442695
  %v333 = vpow.pop %v332
  %v334 = vmul.f32 %v331, 1.442695
  %v335 = vpow.pop %v334
  %v336 = vstv %s27
  %v337 = vmin.f32 %v333, %v336
  %v338 = vmin.f32 %v335, %v336
  %v339 = vld [vmem:[%s4] sm:$0xff]
  %v340 = vld [vmem:[%s4 + $0x8] sm:$0xff]
  %342 = vset.pattern.permute.xlu0 0
  %343 = vperm.xlu0 %342, %v339
  %v344 = vpop.permute.xlu0 %343
  %347 = vset.pattern.permute.xlu0 0
  %348 = vperm.xlu0 %347, %v340
  %v349 = vpop.permute.xlu0 %348
  %v351 = vmul.f32 %v344, %v337
  %v352 = vmul.f32 %v349, %v338
  %v353 = vadd.f32 %v351, %v352
  %v354 = vrot.slane %v353, 4
  %v355 = vadd.f32 %v353, %v354
  %v356 = vrot.slane %v355, 2
  %v357 = vadd.f32 %v355, %v356
  %v358 = vrot.slane %v357, 1
  %v359 = vadd.f32 %v357, %v358
  %v360 = vld [vmem:[%s5] sm:$0xff]
  %v361 = vld [vmem:[%s5 + $0x8] sm:$0xff]
  %v363 = vsel %vm63, %v360, 0
  %v366 = vsel %vm63, %v361, 0
  %368 = vmatprep.subr.mxu0 0.0
  %369 = vmatpush1.msra.mxu0 %v337
  %370 = vmatprep.subr.mxu0 0.0
  %371 = vmatpush1.msra.mxu0 %v338
  %372 = vmatprep.subr.mxu0 0.0
  %373 = vmatpush1.msra.mxu0 0.0
  %374 = vmatprep.subr.mxu0 0.0
  %375 = vmatpush1.msra.mxu0 0.0
  %376 = vmatprep.subr.mxu0 0.0
  %377 = vmatpush1.msra.mxu0 0.0
  %378 = vmatprep.subr.mxu0 0.0
  %379 = vmatpush1.msra.mxu0 0.0
  %380 = vmatprep.subr.mxu0 0.0
  %381 = vmatpush1.msra.mxu0 0.0
  %382 = vmatprep.subr.mxu0 0.0
  %383 = vmatpush1.msra.mxu0 0.0
  %384 = vmatprep.subr.mxu0 0.0
  %385 = vmatpush1.msra.mxu0 0.0
  %386 = vmatprep.subr.mxu0 0.0
  %387 = vmatpush1.msra.mxu0 0.0
  %388 = vmatprep.subr.mxu0 0.0
  %389 = vmatpush1.msra.mxu0 0.0
  %390 = vmatprep.subr.mxu0 0.0
  %391 = vmatpush1.msra.mxu0 0.0
  %392 = vmatprep.subr.mxu0 0.0
  %393 = vmatpush1.msra.mxu0 0.0
  %394 = vmatprep.subr.mxu0 0.0
  %395 = vmatpush1.msra.mxu0 0.0
  %396 = vmatprep.subr.mxu0 0.0
  %397 = vmatpush1.msra.mxu0 0.0
  %398 = vmatprep.subr.mxu0 0.0
  %399 = vmatpush1.msra.mxu0 0.0
  %400 = vmatprep.subr.mxu0 0.0
  %401 = vmatpush1.msra.mxu0 0.0
  %402 = vmatprep.subr.mxu0 0.0
  %403 = vmatpush1.msra.mxu0 0.0
  %404 = vmatprep.subr.mxu0 0.0
  %405 = vmatpush1.msra.mxu0 0.0
  %406 = vmatprep.subr.mxu0 0.0
  %407 = vmatpush1.msra.mxu0 0.0
  %408 = vmatprep.subr.mxu0 0.0
  %409 = vmatpush1.msra.mxu0 0.0
  %410 = vmatprep.subr.mxu0 0.0
  %411 = vmatpush1.msra.mxu0 0.0
  %412 = vmatprep.subr.mxu0 0.0
  %413 = vmatpush1.msra.mxu0 0.0
  %414 = vmatprep.subr.mxu0 0.0
  %415 = vmatpush1.msra.mxu0 0.0
  %416 = vmatprep.subr.mxu0 0.0
  %417 = vmatpush1.msra.mxu0 0.0
  %418 = vmatprep.subr.mxu0 0.0
  %419 = vmatpush1.msra.mxu0 0.0
  %420 = vmatprep.subr.mxu0 0.0
  %421 = vmatpush1.msra.mxu0 0.0
  %422 = vmatprep.subr.mxu0 0.0
  %423 = vmatpush1.msra.mxu0 0.0
  %424 = vmatprep.subr.mxu0 0.0
  %425 = vmatpush1.msra.mxu0 0.0
  %426 = vmatprep.subr.mxu0 0.0
  %427 = vmatpush1.msra.mxu0 0.0
  %428 = vmatprep.subr.mxu0 0.0
  %429 = vmatpush1.msra.mxu0 0.0
  %430 = vmatprep.subr.mxu0 0.0
  %431 = vmatpush1.msra.mxu0 0.0
  %432 = vmatprep.mubr.f32.mxu0 0.0
  %433 = vmatmul.mubr.f32.gmra.mrb[0].mxu0 %v363
  %v434 = vpop.f32.mrb[0].mxu0
  %v435 = vadd.f32 0.0, %v434
  %v436 = vpop.f32.mrb[0].mxu0
  %437 = vmatprep.mubr.f32.mxu0 0.0
  %438 = vmatmul.mubr.f32.gmra.mrb[0].mxu0 %v366
  %v439 = vpop.f32.mrb[0].mxu0
  %v440 = vadd.f32 0.0, %v439
  %v441 = vpop.f32.mrb[0].mxu0
  %442 = vdwg.mxu0
  %v443 = vmul.f32 %v435, %v337
  %v444 = vmul.f32 %v440, %v338
  %v445 = vadd.f32 %v443, %v444
  %v446 = vrot.slane %v445, 4
  %v447 = vadd.f32 %v445, %v446
  %v448 = vrot.slane %v447, 2
  %v449 = vadd.f32 %v447, %v448
  %v450 = vrot.slane %v449, 1
  %v451 = vadd.f32 %v449, %v450
  %v452 = vadd.f32 %v336, %v451
  %vm453 = vcmask 1040384
  %v454 = vsel %vm453, %v359, %v452
  %455 = vst [vmem:[%s7] sm:$0x3] %v454
  // Predicated region
  $region30: #{deep_gp_forward.2} parent=0 // pred_check
    _
  $region31: #{deep_gp_forward.2} parent=0 // pred_check_branch
    %457 = sbr.rel (0) target = $region33
  $region32: #{deep_gp_forward.2} parent=0 // pred_region
    _
  $region33: #{deep_gp_forward.2} parent=0 // pred_fallthru
    _
  // Predicated region
  $region34: #{deep_gp_forward.2} parent=0 // pred_check
    _
  $region35: #{deep_gp_forward.2} parent=0 // pred_check_branch
    %459 = sbr.rel (0) target = $region37
  $region36: #{deep_gp_forward.2} parent=0 // pred_region
    _
  $region37: #{deep_gp_forward.2} parent=0 // pred_fallthru
    _

</llo_original>
